<compile_context>
chip_gen: v6e
topology: v6e:2x2x1
jax: 0.10.0
libtpu: 0.0.40
codegen_flags: <defaults>
</compile_context>

<pallas_src>
import functools
import math

import jax
import jax.numpy as jnp
from jax import lax
from jax.experimental import pallas as pl
from jax.experimental.pallas import tpu as pltpu


def _round_up(x, m):
    return ((x + m - 1) // m) * m


def _vmem_budget_bytes():
    """Per-pallas_call VMEM budget, derived from the chip (headroom kept).

    v5e/v6e: 128 MiB physical -> ~96 MiB budget; v7x: 64 MiB -> ~48 MiB.
    """
    try:
        cap = int(pltpu.get_tpu_info().vmem_capacity_bytes)
    except Exception:  # fall back to the smallest (v7x) capacity
        cap = 64 * 1024 * 1024
    return (cap * 3) // 4


def _pick_chunk(L, bd, d, h, x_bytes, w_bytes, budget):
    """Largest chunk of dilated timesteps whose blocks fit the VMEM budget."""
    # Per dilated timestep: x block (double-buffered, bf16) + o block
    # (double-buffered, f32) + U scratch row-block (f32).
    per_t = bd * (2 * d * x_bytes + 2 * h * 4 + h * 4)
    # Grid-invariant: weights (double-buffered, bf16), bias, hidden scratch.
    fixed = 2 * ((d * h + h * h) * w_bytes + h * 4) + bd * h * 4
    avail = max(budget - fixed, per_t)
    chunk = int(max(1, min(avail // per_t, 64, L)))
    # Make M = chunk*bd a multiple of 256 so the hoisted U GEMM fills the
    # 256-wide MXU (v6e/v7x) when the sequence is long enough to matter.
    align = 256 // math.gcd(bd, 256)
    if chunk >= align:
        chunk = (chunk // align) * align
    return chunk


def _rnn_chunk_kernel(x_ref, wih_ref, whh_ref, b_ref, o_ref, h_ref, u_ref,
                      *, bd, n_t, unroll):
    """Process one chunk of folded (dilated) timesteps.

    x_ref  : (n_t*bd, D)  bf16  folded inputs, timestep-major rows
    wih_ref: (D, H)       bf16  input->hidden weight
    whh_ref: (H, H)       bf16  hidden->hidden weight
    b_ref  : (1, H)       f32   b_ih + b_hh
    o_ref  : (n_t*bd, H)  f32   outputs (written exactly once per step)
    h_ref  : (bd, H)      f32   hidden state carried across chunks (scratch)
    u_ref  : (n_t*bd, H)  f32   hoisted input projection (scratch)
    """
    c = pl.program_id(0)

    # nn.RNN default: zero initial hidden state.
    @pl.when(c == 0)
    def _():
        h_ref[...] = jnp.zeros_like(h_ref)

    # Hoisted input projection for the whole chunk: one lane-dense
    # (n_t*bd, D) @ (D, H) MXU GEMM, f32 accumulation, into a dedicated
    # VMEM scratch (NOT bounced through o_ref).
    u_ref[...] = (
        jnp.dot(x_ref[...], wih_ref[...], preferred_element_type=jnp.float32)
        + b_ref[...])

    w_hh = whh_ref[...]

    # Recurrence: only h @ W_hh (+ tanh) is on the serial chain. h stays f32;
    # it is cast to bf16 only as a matmul operand.
    def step(t, h):
        off = pl.multiple_of(t * bd, bd)
        u_t = u_ref[pl.ds(off, bd), :]
        h_new = jnp.tanh(
            u_t + jnp.dot(h.astype(w_hh.dtype), w_hh,
                          preferred_element_type=jnp.float32))
        o_ref[pl.ds(off, bd), :] = h_new.astype(o_ref.dtype)
        return h_new

    # Partial unroll keeps LLO scheduling visibility without blowing vreg
    # live ranges for long chunks.
    h_ref[...] = lax.fori_loop(0, n_t, step, h_ref[...], unroll=unroll)


def drnn_layer(x, rate, w_ih, w_hh, bias, *, compute_dtype=jnp.bfloat16):
    """One dRNN layer (dilation = rate).  x: (n_steps, B, D) -> (n_steps, B, H)."""
    n_steps, B, D = x.shape
    H = w_hh.shape[0]
    if rate < 1 or rate >= n_steps:
        raise ValueError("The 'rate' variable needs to be adjusted.")

    L = -(-n_steps // rate)                      # ceil(n_steps / rate)
    Bd = rate * B
    Bd_p = _round_up(Bd, 8)                      # sublane alignment only

    x_bytes = jnp.dtype(compute_dtype).itemsize
    budget = _vmem_budget_bytes()
    chunk = _pick_chunk(L, Bd_p, D, H, x_bytes, x_bytes, budget)
    L_p = _round_up(L, chunk)
    n_chunks = L_p // chunk

    # Single merged time padding (rate padding + chunk padding), then fold
    # (torch.cat along batch) and sublane-pad the folded batch. No lane (D/H)
    # padding in HBM.
    xc = x.astype(compute_dtype)
    pad_t = L_p * rate - n_steps
    if pad_t:
        xc = jnp.pad(xc, ((0, pad_t), (0, 0), (0, 0)))
    xc = xc.reshape(L_p, Bd, D)
    if Bd_p != Bd:
        xc = jnp.pad(xc, ((0, 0), (0, Bd_p - Bd), (0, 0)))
    x2d = xc.reshape(L_p * Bd_p, D)              # timestep-major 2-D slab

    w_ih_c = w_ih.astype(compute_dtype)
    w_hh_c = w_hh.astype(compute_dtype)
    bias_f32 = bias.astype(jnp.float32)

    unroll = max(1, min(chunk, 8))

    out2d = pl.pallas_call(
        functools.partial(_rnn_chunk_kernel, bd=Bd_p, n_t=chunk, unroll=unroll),
        out_shape=jax.ShapeDtypeStruct((L_p * Bd_p, H), jnp.float32),
        grid_spec=pltpu.PrefetchScalarGridSpec(
            num_scalar_prefetch=0,
            grid=(n_chunks,),
            in_specs=[
                pl.BlockSpec((chunk * Bd_p, D), lambda c: (c, 0)),
                pl.BlockSpec((D, H), lambda c: (0, 0)),
                pl.BlockSpec((H, H), lambda c: (0, 0)),
                pl.BlockSpec((1, H), lambda c: (0, 0)),
            ],
            out_specs=pl.BlockSpec((chunk * Bd_p, H), lambda c: (c, 0)),
            scratch_shapes=[
                pltpu.VMEM((Bd_p, H), jnp.float32),          # hidden state
                pltpu.VMEM((chunk * Bd_p, H), jnp.float32),  # hoisted U
            ],
        ),
        compiler_params=pltpu.CompilerParams(
            dimension_semantics=("arbitrary",),  # sequential recurrence
            vmem_limit_bytes=budget,
        ),
    )(x2d, w_ih_c, w_hh_c, bias_f32)

    # Unfold: drop padded folded-batch rows, split each dilated step back into
    # `rate` real steps (the torch.split + flatten), truncate time padding.
    out = out2d.reshape(L_p, Bd_p, H)[:, :Bd, :].reshape(L_p * rate, B, H)
    return out[:n_steps]


def multi_drnn_with_dilations(x, params, dilations):
    """x: (n_steps, B, D_in); params: list of (w_ih, w_hh, bias) per layer."""
    for (w_ih, w_hh, bias), rate in zip(params, dilations):
        x = drnn_layer(x, rate, w_ih, w_hh, bias)
    return x


def init_params(key, input_dim, hidden_dim, num_layer):
    """Deterministic nn.RNN-style init: U(-1/sqrt(H), 1/sqrt(H))."""
    params = []
    d_in = input_dim
    bound = 1.0 / jnp.sqrt(hidden_dim)
    for _ in range(num_layer):
        key, k1, k2, k3, k4 = jax.random.split(key, 5)
        w_ih = jax.random.uniform(k1, (d_in, hidden_dim), jnp.float32, -bound, bound)
        w_hh = jax.random.uniform(k2, (hidden_dim, hidden_dim), jnp.float32, -bound, bound)
        b_ih = jax.random.uniform(k3, (hidden_dim,), jnp.float32, -bound, bound)
        b_hh = jax.random.uniform(k4, (hidden_dim,), jnp.float32, -bound, bound)
        bias = (b_ih + b_hh).reshape(1, hidden_dim)
        params.append((w_ih, w_hh, bias))
        d_in = hidden_dim
    return params


# ---- pure-JAX f32 reference (for a correctness sanity check in __main__) ----
def _ref_drnn_layer(x, rate, w_ih, w_hh, bias):
    n_steps, B, D = x.shape
    H = w_hh.shape[0]
    L = -(-n_steps // rate)
    xp = jnp.pad(x, ((0, L * rate - n_steps), (0, 0), (0, 0)))
    folded = xp.reshape(L, rate * B, D)

    def step(h, xt):
        h = jnp.tanh(xt @ w_ih + bias + h @ w_hh)
        return h, h

    h0 = jnp.zeros((rate * B, H), jnp.float32)
    _, ys = lax.scan(step, h0, folded)
    return ys.reshape(L * rate, B, H)[:n_steps]


def _ref_multi_drnn(x, params, dilations):
    for (w_ih, w_hh, bias), rate in zip(params, dilations):
        x = _ref_drnn_layer(x, rate, w_ih, w_hh, bias)
    return x


if __name__ == "__main__":
    # Shapes consistent with the module: list of n_steps=8 tensors, each
    # (batch=2, input_dims=4); 3 layers, hidden=32, dilations [1, 2, 4].
    n_steps, batch, input_dim, hidden_dim = 8, 2, 4, 32
    dilations = (1, 2, 4)
    num_layer = len(dilations)

    key = jax.random.PRNGKey(0)
    key, xk = jax.random.split(key)
    x = jax.random.normal(xk, (n_steps, batch, input_dim), jnp.float32)
    params = init_params(key, input_dim, hidden_dim, num_layer)

    run = jax.jit(multi_drnn_with_dilations, static_argnums=2)
    out = jax.block_until_ready(run(x, params, dilations))

    assert out.shape == (n_steps, batch, hidden_dim), out.shape
    assert bool(jnp.all(jnp.isfinite(out)))

    ref = _ref_multi_drnn(x, params, dilations)
    err = float(jnp.max(jnp.abs(out - ref)))
    assert err < 1e-1, f"max abs error vs f32 reference: {err}"
    print("KERNEL_OK")
</pallas_src>

<mosaic_0001>
module attributes {stable_mosaic.version = 11 : i64} {
  func.func @_rnn_chunk_kernel(%arg0: i32, %arg1: memref<64x4xbf16, #tpu.memory_space<vmem>>, %arg2: memref<4x32xbf16, #tpu.memory_space<vmem>>, %arg3: memref<32x32xbf16, #tpu.memory_space<vmem>>, %arg4: memref<1x32xf32, #tpu.memory_space<vmem>>, %arg5: memref<64x32xf32, #tpu.memory_space<vmem>>, %arg6: memref<8x32xf32, #tpu.memory_space<vmem>>, %arg7: memref<64x32xf32, #tpu.memory_space<vmem>>) attributes {dimension_semantics = [#tpu.dimension_semantics<arbitrary>], iteration_bounds = array<i64: 1>, scalar_prefetch = 0 : i64, scratch_operands = 2 : i64, tpu.core_type = #tpu.core_type<tc>, window_params = [{transform_indices = @transform_0, window_bounds = array<i64: 64, 4>}, {pipeline_mode = #tpu.pipeline_mode<synchronous>, transform_indices = @transform_1, window_bounds = array<i64: 4, 32>}, {pipeline_mode = #tpu.pipeline_mode<synchronous>, transform_indices = @transform_2, window_bounds = array<i64: 32, 32>}, {pipeline_mode = #tpu.pipeline_mode<synchronous>, transform_indices = @transform_3, window_bounds = array<i64: 1, 32>}, {transform_indices = @transform_4, window_bounds = array<i64: 64, 32>}]} {
    %c0_i32 = arith.constant 0 : i32
    %0 = arith.cmpi eq, %arg0, %c0_i32 : i32
    %1 = arith.extui %0 : i1 to i32
    %c0_i32_0 = arith.constant 0 : i32
    %2 = arith.cmpi ne, %1, %c0_i32_0 : i32
    scf.if %2 {
      %cst_47 = arith.constant 0.000000e+00 : f32
      %93 = vector.broadcast %cst_47 : f32 to vector<8x32xf32>
      %c0_48 = arith.constant 0 : index
      %c0_49 = arith.constant 0 : index
      %94 = vector.load %arg6[%c0_48, %c0_49] : memref<8x32xf32, #tpu.memory_space<vmem>>, vector<8x32xf32>
      tpu.vector_store %arg6[%c0_48, %c0_49], %93 {strides = array<i32>} : memref<8x32xf32, #tpu.memory_space<vmem>>, vector<8x32xf32>,
    } else {
    }
    %c0 = arith.constant 0 : index
    %c0_1 = arith.constant 0 : index
    %3 = vector.load %arg1[%c0, %c0_1] : memref<64x4xbf16, #tpu.memory_space<vmem>>, vector<64x4xbf16>
    %c0_2 = arith.constant 0 : index
    %c0_3 = arith.constant 0 : index
    %4 = vector.load %arg2[%c0_2, %c0_3] : memref<4x32xbf16, #tpu.memory_space<vmem>>, vector<4x32xbf16>
    %cst = arith.constant dense<0.000000e+00> : vector<64x32xf32>
    %5 = tpu.matmul %3, %4, %cst {dimension_numbers = #tpu.dot_dimension_numbers<[1], [0], [0], [1], [0, 0, 1, 1], [], []>} : vector<64x4xbf16>, vector<4x32xbf16>, vector<64x32xf32> -> vector<64x32xf32>
    %c0_4 = arith.constant 0 : index
    %c0_5 = arith.constant 0 : index
    %6 = vector.load %arg4[%c0_4, %c0_5] : memref<1x32xf32, #tpu.memory_space<vmem>>, vector<1x32xf32>
    %7 = vector.broadcast %6 : vector<1x32xf32> to vector<64x32xf32>
    %8 = arith.addf %5, %7 : vector<64x32xf32>
    %c0_6 = arith.constant 0 : index
    %c0_7 = arith.constant 0 : index
    %9 = vector.load %arg7[%c0_6, %c0_7] : memref<64x32xf32, #tpu.memory_space<vmem>>, vector<64x32xf32>
    tpu.vector_store %arg7[%c0_6, %c0_7], %8 {strides = array<i32>} : memref<64x32xf32, #tpu.memory_space<vmem>>, vector<64x32xf32>,
    %c0_8 = arith.constant 0 : index
    %c0_9 = arith.constant 0 : index
    %10 = vector.load %arg3[%c0_8, %c0_9] : memref<32x32xbf16, #tpu.memory_space<vmem>>, vector<32x32xbf16>
    %c0_10 = arith.constant 0 : index
    %c0_11 = arith.constant 0 : index
    %11 = vector.load %arg6[%c0_10, %c0_11] : memref<8x32xf32, #tpu.memory_space<vmem>>, vector<8x32xf32>
    %c0_i32_12 = arith.constant 0 : i32
    %c8_i32 = arith.constant 8 : i32
    %12 = arith.muli %c0_i32_12, %c8_i32 : i32
    %13 = tpu.assume_multiple %12, 8 : i32
    %14 = arith.index_cast %13 : i32 to index
    %c0_13 = arith.constant 0 : index
    %15 = vector.load %arg7[%14, %c0_13] : memref<64x32xf32, #tpu.memory_space<vmem>>, vector<8x32xf32>
    %16 = arith.truncf %11 : vector<8x32xf32> to vector<8x32xbf16>
    %cst_14 = arith.constant dense<0.000000e+00> : vector<8x32xf32>
    %17 = tpu.matmul %16, %10, %cst_14 {dimension_numbers = #tpu.dot_dimension_numbers<[1], [0], [0], [1], [0, 0, 1, 1], [], []>} : vector<8x32xbf16>, vector<32x32xbf16>, vector<8x32xf32> -> vector<8x32xf32>
    %18 = arith.addf %15, %17 : vector<8x32xf32>
    %19 = math.tanh %18 : vector<8x32xf32>
    %20 = arith.index_cast %13 : i32 to index
    %c0_15 = arith.constant 0 : index
    %21 = vector.load %arg5[%20, %c0_15] : memref<64x32xf32, #tpu.memory_space<vmem>>, vector<8x32xf32>
    tpu.vector_store %arg5[%20, %c0_15], %19 {strides = array<i32>} : memref<64x32xf32, #tpu.memory_space<vmem>>, vector<8x32xf32>,
    %c1_i32 = arith.constant 1 : i32
    %c8_i32_16 = arith.constant 8 : i32
    %22 = arith.muli %c1_i32, %c8_i32_16 : i32
    %23 = tpu.assume_multiple %22, 8 : i32
    %24 = arith.index_cast %23 : i32 to index
    %c0_17 = arith.constant 0 : index
    %25 = vector.load %arg7[%24, %c0_17] : memref<64x32xf32, #tpu.memory_space<vmem>>, vector<8x32xf32>
    %26 = arith.truncf %19 : vector<8x32xf32> to vector<8x32xbf16>
    %cst_18 = arith.constant dense<0.000000e+00> : vector<8x32xf32>
    %27 = tpu.matmul %26, %10, %cst_18 {dimension_numbers = #tpu.dot_dimension_numbers<[1], [0], [0], [1], [0, 0, 1, 1], [], []>} : vector<8x32xbf16>, vector<32x32xbf16>, vector<8x32xf32> -> vector<8x32xf32>
    %28 = arith.addf %25, %27 : vector<8x32xf32>
    %29 = math.tanh %28 : vector<8x32xf32>
    %30 = arith.index_cast %23 : i32 to index
    %c0_19 = arith.constant 0 : index
    %31 = vector.load %arg5[%30, %c0_19] : memref<64x32xf32, #tpu.memory_space<vmem>>, vector<8x32xf32>
    tpu.vector_store %arg5[%30, %c0_19], %29 {strides = array<i32>} : memref<64x32xf32, #tpu.memory_space<vmem>>, vector<8x32xf32>,
    %c2_i32 = arith.constant 2 : i32
    %c8_i32_20 = arith.constant 8 : i32
    %32 = arith.muli %c2_i32, %c8_i32_20 : i32
    %33 = tpu.assume_multiple %32, 8 : i32
    %34 = arith.index_cast %33 : i32 to index
    %c0_21 = arith.constant 0 : index
    %35 = vector.load %arg7[%34, %c0_21] : memref<64x32xf32, #tpu.memory_space<vmem>>, vector<8x32xf32>
    %36 = arith.truncf %29 : vector<8x32xf32> to vector<8x32xbf16>
    %cst_22 = arith.constant dense<0.000000e+00> : vector<8x32xf32>
    %37 = tpu.matmul %36, %10, %cst_22 {dimension_numbers = #tpu.dot_dimension_numbers<[1], [0], [0], [1], [0, 0, 1, 1], [], []>} : vector<8x32xbf16>, vector<32x32xbf16>, vector<8x32xf32> -> vector<8x32xf32>
    %38 = arith.addf %35, %37 : vector<8x32xf32>
    %39 = math.tanh %38 : vector<8x32xf32>
    %40 = arith.index_cast %33 : i32 to index
    %c0_23 = arith.constant 0 : index
    %41 = vector.load %arg5[%40, %c0_23] : memref<64x32xf32, #tpu.memory_space<vmem>>, vector<8x32xf32>
    tpu.vector_store %arg5[%40, %c0_23], %39 {strides = array<i32>} : memref<64x32xf32, #tpu.memory_space<vmem>>, vector<8x32xf32>,
    %c3_i32 = arith.constant 3 : i32
    %c8_i32_24 = arith.constant 8 : i32
    %42 = arith.muli %c3_i32, %c8_i32_24 : i32
    %43 = tpu.assume_multiple %42, 8 : i32
    %44 = arith.index_cast %43 : i32 to index
    %c0_25 = arith.constant 0 : index
    %45 = vector.load %arg7[%44, %c0_25] : memref<64x32xf32, #tpu.memory_space<vmem>>, vector<8x32xf32>
    %46 = arith.truncf %39 : vector<8x32xf32> to vector<8x32xbf16>
    %cst_26 = arith.constant dense<0.000000e+00> : vector<8x32xf32>
    %47 = tpu.matmul %46, %10, %cst_26 {dimension_numbers = #tpu.dot_dimension_numbers<[1], [0], [0], [1], [0, 0, 1, 1], [], []>} : vector<8x32xbf16>, vector<32x32xbf16>, vector<8x32xf32> -> vector<8x32xf32>
    %48 = arith.addf %45, %47 : vector<8x32xf32>
    %49 = math.tanh %48 : vector<8x32xf32>
    %50 = arith.index_cast %43 : i32 to index
    %c0_27 = arith.constant 0 : index
    %51 = vector.load %arg5[%50, %c0_27] : memref<64x32xf32, #tpu.memory_space<vmem>>, vector<8x32xf32>
    tpu.vector_store %arg5[%50, %c0_27], %49 {strides = array<i32>} : memref<64x32xf32, #tpu.memory_space<vmem>>, vector<8x32xf32>,
    %c4_i32 = arith.constant 4 : i32
    %c8_i32_28 = arith.constant 8 : i32
    %52 = arith.muli %c4_i32, %c8_i32_28 : i32
    %53 = tpu.assume_multiple %52, 8 : i32
    %54 = arith.index_cast %53 : i32 to index
    %c0_29 = arith.constant 0 : index
    %55 = vector.load %arg7[%54, %c0_29] : memref<64x32xf32, #tpu.memory_space<vmem>>, vector<8x32xf32>
    %56 = arith.truncf %49 : vector<8x32xf32> to vector<8x32xbf16>
    %cst_30 = arith.constant dense<0.000000e+00> : vector<8x32xf32>
    %57 = tpu.matmul %56, %10, %cst_30 {dimension_numbers = #tpu.dot_dimension_numbers<[1], [0], [0], [1], [0, 0, 1, 1], [], []>} : vector<8x32xbf16>, vector<32x32xbf16>, vector<8x32xf32> -> vector<8x32xf32>
    %58 = arith.addf %55, %57 : vector<8x32xf32>
    %59 = math.tanh %58 : vector<8x32xf32>
    %60 = arith.index_cast %53 : i32 to index
    %c0_31 = arith.constant 0 : index
    %61 = vector.load %arg5[%60, %c0_31] : memref<64x32xf32, #tpu.memory_space<vmem>>, vector<8x32xf32>
    tpu.vector_store %arg5[%60, %c0_31], %59 {strides = array<i32>} : memref<64x32xf32, #tpu.memory_space<vmem>>, vector<8x32xf32>,
    %c5_i32 = arith.constant 5 : i32
    %c8_i32_32 = arith.constant 8 : i32
    %62 = arith.muli %c5_i32, %c8_i32_32 : i32
    %63 = tpu.assume_multiple %62, 8 : i32
    %64 = arith.index_cast %63 : i32 to index
    %c0_33 = arith.constant 0 : index
    %65 = vector.load %arg7[%64, %c0_33] : memref<64x32xf32, #tpu.memory_space<vmem>>, vector<8x32xf32>
    %66 = arith.truncf %59 : vector<8x32xf32> to vector<8x32xbf16>
    %cst_34 = arith.constant dense<0.000000e+00> : vector<8x32xf32>
    %67 = tpu.matmul %66, %10, %cst_34 {dimension_numbers = #tpu.dot_dimension_numbers<[1], [0], [0], [1], [0, 0, 1, 1], [], []>} : vector<8x32xbf16>, vector<32x32xbf16>, vector<8x32xf32> -> vector<8x32xf32>
    %68 = arith.addf %65, %67 : vector<8x32xf32>
    %69 = math.tanh %68 : vector<8x32xf32>
    %70 = arith.index_cast %63 : i32 to index
    %c0_35 = arith.constant 0 : index
    %71 = vector.load %arg5[%70, %c0_35] : memref<64x32xf32, #tpu.memory_space<vmem>>, vector<8x32xf32>
    tpu.vector_store %arg5[%70, %c0_35], %69 {strides = array<i32>} : memref<64x32xf32, #tpu.memory_space<vmem>>, vector<8x32xf32>,
    %c6_i32 = arith.constant 6 : i32
    %c8_i32_36 = arith.constant 8 : i32
    %72 = arith.muli %c6_i32, %c8_i32_36 : i32
    %73 = tpu.assume_multiple %72, 8 : i32
    %74 = arith.index_cast %73 : i32 to index
    %c0_37 = arith.constant 0 : index
    %75 = vector.load %arg7[%74, %c0_37] : memref<64x32xf32, #tpu.memory_space<vmem>>, vector<8x32xf32>
    %76 = arith.truncf %69 : vector<8x32xf32> to vector<8x32xbf16>
    %cst_38 = arith.constant dense<0.000000e+00> : vector<8x32xf32>
    %77 = tpu.matmul %76, %10, %cst_38 {dimension_numbers = #tpu.dot_dimension_numbers<[1], [0], [0], [1], [0, 0, 1, 1], [], []>} : vector<8x32xbf16>, vector<32x32xbf16>, vector<8x32xf32> -> vector<8x32xf32>
    %78 = arith.addf %75, %77 : vector<8x32xf32>
    %79 = math.tanh %78 : vector<8x32xf32>
    %80 = arith.index_cast %73 : i32 to index
    %c0_39 = arith.constant 0 : index
    %81 = vector.load %arg5[%80, %c0_39] : memref<64x32xf32, #tpu.memory_space<vmem>>, vector<8x32xf32>
    tpu.vector_store %arg5[%80, %c0_39], %79 {strides = array<i32>} : memref<64x32xf32, #tpu.memory_space<vmem>>, vector<8x32xf32>,
    %c7_i32 = arith.constant 7 : i32
    %c8_i32_40 = arith.constant 8 : i32
    %82 = arith.muli %c7_i32, %c8_i32_40 : i32
    %83 = tpu.assume_multiple %82, 8 : i32
    %84 = arith.index_cast %83 : i32 to index
    %c0_41 = arith.constant 0 : index
    %85 = vector.load %arg7[%84, %c0_41] : memref<64x32xf32, #tpu.memory_space<vmem>>, vector<8x32xf32>
    %86 = arith.truncf %79 : vector<8x32xf32> to vector<8x32xbf16>
    %cst_42 = arith.constant dense<0.000000e+00> : vector<8x32xf32>
    %87 = tpu.matmul %86, %10, %cst_42 {dimension_numbers = #tpu.dot_dimension_numbers<[1], [0], [0], [1], [0, 0, 1, 1], [], []>} : vector<8x32xbf16>, vector<32x32xbf16>, vector<8x32xf32> -> vector<8x32xf32>
    %88 = arith.addf %85, %87 : vector<8x32xf32>
    %89 = math.tanh %88 : vector<8x32xf32>
    %90 = arith.index_cast %83 : i32 to index
    %c0_43 = arith.constant 0 : index
    %91 = vector.load %arg5[%90, %c0_43] : memref<64x32xf32, #tpu.memory_space<vmem>>, vector<8x32xf32>
    tpu.vector_store %arg5[%90, %c0_43], %89 {strides = array<i32>} : memref<64x32xf32, #tpu.memory_space<vmem>>, vector<8x32xf32>,
    %c8_i32_44 = arith.constant 8 : i32
    %c0_45 = arith.constant 0 : index
    %c0_46 = arith.constant 0 : index
    %92 = vector.load %arg6[%c0_45, %c0_46] : memref<8x32xf32, #tpu.memory_space<vmem>>, vector<8x32xf32>
    tpu.vector_store %arg6[%c0_45, %c0_46], %89 {strides = array<i32>} : memref<8x32xf32, #tpu.memory_space<vmem>>, vector<8x32xf32>,
    return
  }
  func.func @transform_0(%arg0: i32) -> (i32, i32) {
    %c0_i32 = arith.constant 0 : i32
    %c0_i32_0 = arith.constant 0 : i32
    return %arg0, %c0_i32 : i32, i32
  }
  func.func @transform_1(%arg0: i32) -> (i32, i32) {
    %c0_i32 = arith.constant 0 : i32
    %c0_i32_0 = arith.constant 0 : i32
    %c0_i32_1 = arith.constant 0 : i32
    return %c0_i32, %c0_i32_0 : i32, i32
  }
  func.func @transform_2(%arg0: i32) -> (i32, i32) {
    %c0_i32 = arith.constant 0 : i32
    %c0_i32_0 = arith.constant 0 : i32
    %c0_i32_1 = arith.constant 0 : i32
    return %c0_i32, %c0_i32_0 : i32, i32
  }
  func.func @transform_3(%arg0: i32) -> (i32, i32) {
    %c0_i32 = arith.constant 0 : i32
    %c0_i32_0 = arith.constant 0 : i32
    %c0_i32_1 = arith.constant 0 : i32
    return %c0_i32, %c0_i32_0 : i32, i32
  }
  func.func @transform_4(%arg0: i32) -> (i32, i32) {
    %c0_i32 = arith.constant 0 : i32
    %c0_i32_0 = arith.constant 0 : i32
    return %arg0, %c0_i32 : i32, i32
  }
}

module attributes {stable_mosaic.version = 11 : i64} {
  func.func @_rnn_chunk_kernel(%arg0: i32, %arg1: memref<32x32xbf16, #tpu.memory_space<vmem>>, %arg2: memref<32x32xbf16, #tpu.memory_space<vmem>>, %arg3: memref<32x32xbf16, #tpu.memory_space<vmem>>, %arg4: memref<1x32xf32, #tpu.memory_space<vmem>>, %arg5: memref<32x32xf32, #tpu.memory_space<vmem>>, %arg6: memref<8x32xf32, #tpu.memory_space<vmem>>, %arg7: memref<32x32xf32, #tpu.memory_space<vmem>>) attributes {dimension_semantics = [#tpu.dimension_semantics<arbitrary>], iteration_bounds = array<i64: 1>, scalar_prefetch = 0 : i64, scratch_operands = 2 : i64, tpu.core_type = #tpu.core_type<tc>, window_params = [{transform_indices = @transform_0, window_bounds = array<i64: 32, 32>}, {pipeline_mode = #tpu.pipeline_mode<synchronous>, transform_indices = @transform_1, window_bounds = array<i64: 32, 32>}, {pipeline_mode = #tpu.pipeline_mode<synchronous>, transform_indices = @transform_2, window_bounds = array<i64: 32, 32>}, {pipeline_mode = #tpu.pipeline_mode<synchronous>, transform_indices = @transform_3, window_bounds = array<i64: 1, 32>}, {transform_indices = @transform_4, window_bounds = array<i64: 32, 32>}]} {
    %c0_i32 = arith.constant 0 : i32
    %0 = arith.cmpi eq, %arg0, %c0_i32 : i32
    %1 = arith.extui %0 : i1 to i32
    %c0_i32_0 = arith.constant 0 : i32
    %2 = arith.cmpi ne, %1, %c0_i32_0 : i32
    scf.if %2 {
      %cst_30 = arith.constant 0.000000e+00 : f32
      %53 = vector.broadcast %cst_30 : f32 to vector<8x32xf32>
      %c0_31 = arith.constant 0 : index
      %c0_32 = arith.constant 0 : index
      %54 = vector.load %arg6[%c0_31, %c0_32] : memref<8x32xf32, #tpu.memory_space<vmem>>, vector<8x32xf32>
      tpu.vector_store %arg6[%c0_31, %c0_32], %53 {strides = array<i32>} : memref<8x32xf32, #tpu.memory_space<vmem>>, vector<8x32xf32>,
    } else {
    }
    %c0 = arith.constant 0 : index
    %c0_1 = arith.constant 0 : index
    %3 = vector.load %arg1[%c0, %c0_1] : memref<32x32xbf16, #tpu.memory_space<vmem>>, vector<32x32xbf16>
    %c0_2 = arith.constant 0 : index
    %c0_3 = arith.constant 0 : index
    %4 = vector.load %arg2[%c0_2, %c0_3] : memref<32x32xbf16, #tpu.memory_space<vmem>>, vector<32x32xbf16>
    %cst = arith.constant dense<0.000000e+00> : vector<32x32xf32>
    %5 = tpu.matmul %3, %4, %cst {dimension_numbers = #tpu.dot_dimension_numbers<[1], [0], [0], [1], [0, 0, 1, 1], [], []>} : vector<32x32xbf16>, vector<32x32xbf16>, vector<32x32xf32> -> vector<32x32xf32>
    %c0_4 = arith.constant 0 : index
    %c0_5 = arith.constant 0 : index
    %6 = vector.load %arg4[%c0_4, %c0_5] : memref<1x32xf32, #tpu.memory_space<vmem>>, vector<1x32xf32>
    %7 = vector.broadcast %6 : vector<1x32xf32> to vector<32x32xf32>
    %8 = arith.addf %5, %7 : vector<32x32xf32>
    %c0_6 = arith.constant 0 : index
    %c0_7 = arith.constant 0 : index
    %9 = vector.load %arg7[%c0_6, %c0_7] : memref<32x32xf32, #tpu.memory_space<vmem>>, vector<32x32xf32>
    tpu.vector_store %arg7[%c0_6, %c0_7], %8 {strides = array<i32>} : memref<32x32xf32, #tpu.memory_space<vmem>>, vector<32x32xf32>,
    %c0_8 = arith.constant 0 : index
    %c0_9 = arith.constant 0 : index
    %10 = vector.load %arg3[%c0_8, %c0_9] : memref<32x32xbf16, #tpu.memory_space<vmem>>, vector<32x32xbf16>
    %c0_10 = arith.constant 0 : index
    %c0_11 = arith.constant 0 : index
    %11 = vector.load %arg6[%c0_10, %c0_11] : memref<8x32xf32, #tpu.memory_space<vmem>>, vector<8x32xf32>
    %c0_i32_12 = arith.constant 0 : i32
    %c8_i32 = arith.constant 8 : i32
    %12 = arith.muli %c0_i32_12, %c8_i32 : i32
    %13 = tpu.assume_multiple %12, 8 : i32
    %14 = arith.index_cast %13 : i32 to index
    %c0_13 = arith.constant 0 : index
    %15 = vector.load %arg7[%14, %c0_13] : memref<32x32xf32, #tpu.memory_space<vmem>>, vector<8x32xf32>
    %16 = arith.truncf %11 : vector<8x32xf32> to vector<8x32xbf16>
    %cst_14 = arith.constant dense<0.000000e+00> : vector<8x32xf32>
    %17 = tpu.matmul %16, %10, %cst_14 {dimension_numbers = #tpu.dot_dimension_numbers<[1], [0], [0], [1], [0, 0, 1, 1], [], []>} : vector<8x32xbf16>, vector<32x32xbf16>, vector<8x32xf32> -> vector<8x32xf32>
    %18 = arith.addf %15, %17 : vector<8x32xf32>
    %19 = math.tanh %18 : vector<8x32xf32>
    %20 = arith.index_cast %13 : i32 to index
    %c0_15 = arith.constant 0 : index
    %21 = vector.load %arg5[%20, %c0_15] : memref<32x32xf32, #tpu.memory_space<vmem>>, vector<8x32xf32>
    tpu.vector_store %arg5[%20, %c0_15], %19 {strides = array<i32>} : memref<32x32xf32, #tpu.memory_space<vmem>>, vector<8x32xf32>,
    %c1_i32 = arith.constant 1 : i32
    %c8_i32_16 = arith.constant 8 : i32
    %22 = arith.muli %c1_i32, %c8_i32_16 : i32
    %23 = tpu.assume_multiple %22, 8 : i32
    %24 = arith.index_cast %23 : i32 to index
    %c0_17 = arith.constant 0 : index
    %25 = vector.load %arg7[%24, %c0_17] : memref<32x32xf32, #tpu.memory_space<vmem>>, vector<8x32xf32>
    %26 = arith.truncf %19 : vector<8x32xf32> to vector<8x32xbf16>
    %cst_18 = arith.constant dense<0.000000e+00> : vector<8x32xf32>
    %27 = tpu.matmul %26, %10, %cst_18 {dimension_numbers = #tpu.dot_dimension_numbers<[1], [0], [0], [1], [0, 0, 1, 1], [], []>} : vector<8x32xbf16>, vector<32x32xbf16>, vector<8x32xf32> -> vector<8x32xf32>
    %28 = arith.addf %25, %27 : vector<8x32xf32>
    %29 = math.tanh %28 : vector<8x32xf32>
    %30 = arith.index_cast %23 : i32 to index
    %c0_19 = arith.constant 0 : index
    %31 = vector.load %arg5[%30, %c0_19] : memref<32x32xf32, #tpu.memory_space<vmem>>, vector<8x32xf32>
    tpu.vector_store %arg5[%30, %c0_19], %29 {strides = array<i32>} : memref<32x32xf32, #tpu.memory_space<vmem>>, vector<8x32xf32>,
    %c2_i32 = arith.constant 2 : i32
    %c8_i32_20 = arith.constant 8 : i32
    %32 = arith.muli %c2_i32, %c8_i32_20 : i32
    %33 = tpu.assume_multiple %32, 8 : i32
    %34 = arith.index_cast %33 : i32 to index
    %c0_21 = arith.constant 0 : index
    %35 = vector.load %arg7[%34, %c0_21] : memref<32x32xf32, #tpu.memory_space<vmem>>, vector<8x32xf32>
    %36 = arith.truncf %29 : vector<8x32xf32> to vector<8x32xbf16>
    %cst_22 = arith.constant dense<0.000000e+00> : vector<8x32xf32>
    %37 = tpu.matmul %36, %10, %cst_22 {dimension_numbers = #tpu.dot_dimension_numbers<[1], [0], [0], [1], [0, 0, 1, 1], [], []>} : vector<8x32xbf16>, vector<32x32xbf16>, vector<8x32xf32> -> vector<8x32xf32>
    %38 = arith.addf %35, %37 : vector<8x32xf32>
    %39 = math.tanh %38 : vector<8x32xf32>
    %40 = arith.index_cast %33 : i32 to index
    %c0_23 = arith.constant 0 : index
    %41 = vector.load %arg5[%40, %c0_23] : memref<32x32xf32, #tpu.memory_space<vmem>>, vector<8x32xf32>
    tpu.vector_store %arg5[%40, %c0_23], %39 {strides = array<i32>} : memref<32x32xf32, #tpu.memory_space<vmem>>, vector<8x32xf32>,
    %c3_i32 = arith.constant 3 : i32
    %c8_i32_24 = arith.constant 8 : i32
    %42 = arith.muli %c3_i32, %c8_i32_24 : i32
    %43 = tpu.assume_multiple %42, 8 : i32
    %44 = arith.index_cast %43 : i32 to index
    %c0_25 = arith.constant 0 : index
    %45 = vector.load %arg7[%44, %c0_25] : memref<32x32xf32, #tpu.memory_space<vmem>>, vector<8x32xf32>
    %46 = arith.truncf %39 : vector<8x32xf32> to vector<8x32xbf16>
    %cst_26 = arith.constant dense<0.000000e+00> : vector<8x32xf32>
    %47 = tpu.matmul %46, %10, %cst_26 {dimension_numbers = #tpu.dot_dimension_numbers<[1], [0], [0], [1], [0, 0, 1, 1], [], []>} : vector<8x32xbf16>, vector<32x32xbf16>, vector<8x32xf32> -> vector<8x32xf32>
    %48 = arith.addf %45, %47 : vector<8x32xf32>
    %49 = math.tanh %48 : vector<8x32xf32>
    %50 = arith.index_cast %43 : i32 to index
    %c0_27 = arith.constant 0 : index
    %51 = vector.load %arg5[%50, %c0_27] : memref<32x32xf32, #tpu.memory_space<vmem>>, vector<8x32xf32>
    tpu.vector_store %arg5[%50, %c0_27], %49 {strides = array<i32>} : memref<32x32xf32, #tpu.memory_space<vmem>>, vector<8x32xf32>,
    %c4_i32 = arith.constant 4 : i32
    %c0_28 = arith.constant 0 : index
    %c0_29 = arith.constant 0 : index
    %52 = vector.load %arg6[%c0_28, %c0_29] : memref<8x32xf32, #tpu.memory_space<vmem>>, vector<8x32xf32>
    tpu.vector_store %arg6[%c0_28, %c0_29], %49 {strides = array<i32>} : memref<8x32xf32, #tpu.memory_space<vmem>>, vector<8x32xf32>,
    return
  }
  func.func @transform_0(%arg0: i32) -> (i32, i32) {
    %c0_i32 = arith.constant 0 : i32
    %c0_i32_0 = arith.constant 0 : i32
    return %arg0, %c0_i32 : i32, i32
  }
  func.func @transform_1(%arg0: i32) -> (i32, i32) {
    %c0_i32 = arith.constant 0 : i32
    %c0_i32_0 = arith.constant 0 : i32
    %c0_i32_1 = arith.constant 0 : i32
    return %c0_i32, %c0_i32_0 : i32, i32
  }
  func.func @transform_2(%arg0: i32) -> (i32, i32) {
    %c0_i32 = arith.constant 0 : i32
    %c0_i32_0 = arith.constant 0 : i32
    %c0_i32_1 = arith.constant 0 : i32
    return %c0_i32, %c0_i32_0 : i32, i32
  }
  func.func @transform_3(%arg0: i32) -> (i32, i32) {
    %c0_i32 = arith.constant 0 : i32
    %c0_i32_0 = arith.constant 0 : i32
    %c0_i32_1 = arith.constant 0 : i32
    return %c0_i32, %c0_i32_0 : i32, i32
  }
  func.func @transform_4(%arg0: i32) -> (i32, i32) {
    %c0_i32 = arith.constant 0 : i32
    %c0_i32_0 = arith.constant 0 : i32
    return %arg0, %c0_i32 : i32, i32
  }
}

module attributes {stable_mosaic.version = 11 : i64} {
  func.func @_rnn_chunk_kernel(%arg0: i32, %arg1: memref<16x32xbf16, #tpu.memory_space<vmem>>, %arg2: memref<32x32xbf16, #tpu.memory_space<vmem>>, %arg3: memref<32x32xbf16, #tpu.memory_space<vmem>>, %arg4: memref<1x32xf32, #tpu.memory_space<vmem>>, %arg5: memref<16x32xf32, #tpu.memory_space<vmem>>, %arg6: memref<8x32xf32, #tpu.memory_space<vmem>>, %arg7: memref<16x32xf32, #tpu.memory_space<vmem>>) attributes {dimension_semantics = [#tpu.dimension_semantics<arbitrary>], iteration_bounds = array<i64: 1>, scalar_prefetch = 0 : i64, scratch_operands = 2 : i64, tpu.core_type = #tpu.core_type<tc>, window_params = [{transform_indices = @transform_0, window_bounds = array<i64: 16, 32>}, {pipeline_mode = #tpu.pipeline_mode<synchronous>, transform_indices = @transform_1, window_bounds = array<i64: 32, 32>}, {pipeline_mode = #tpu.pipeline_mode<synchronous>, transform_indices = @transform_2, window_bounds = array<i64: 32, 32>}, {pipeline_mode = #tpu.pipeline_mode<synchronous>, transform_indices = @transform_3, window_bounds = array<i64: 1, 32>}, {transform_indices = @transform_4, window_bounds = array<i64: 16, 32>}]} {
    %c0_i32 = arith.constant 0 : i32
    %0 = arith.cmpi eq, %arg0, %c0_i32 : i32
    %1 = arith.extui %0 : i1 to i32
    %c0_i32_0 = arith.constant 0 : i32
    %2 = arith.cmpi ne, %1, %c0_i32_0 : i32
    scf.if %2 {
      %cst_22 = arith.constant 0.000000e+00 : f32
      %33 = vector.broadcast %cst_22 : f32 to vector<8x32xf32>
      %c0_23 = arith.constant 0 : index
      %c0_24 = arith.constant 0 : index
      %34 = vector.load %arg6[%c0_23, %c0_24] : memref<8x32xf32, #tpu.memory_space<vmem>>, vector<8x32xf32>
      tpu.vector_store %arg6[%c0_23, %c0_24], %33 {strides = array<i32>} : memref<8x32xf32, #tpu.memory_space<vmem>>, vector<8x32xf32>,
    } else {
    }
    %c0 = arith.constant 0 : index
    %c0_1 = arith.constant 0 : index
    %3 = vector.load %arg1[%c0, %c0_1] : memref<16x32xbf16, #tpu.memory_space<vmem>>, vector<16x32xbf16>
    %c0_2 = arith.constant 0 : index
    %c0_3 = arith.constant 0 : index
    %4 = vector.load %arg2[%c0_2, %c0_3] : memref<32x32xbf16, #tpu.memory_space<vmem>>, vector<32x32xbf16>
    %cst = arith.constant dense<0.000000e+00> : vector<16x32xf32>
    %5 = tpu.matmul %3, %4, %cst {dimension_numbers = #tpu.dot_dimension_numbers<[1], [0], [0], [1], [0, 0, 1, 1], [], []>} : vector<16x32xbf16>, vector<32x32xbf16>, vector<16x32xf32> -> vector<16x32xf32>
    %c0_4 = arith.constant 0 : index
    %c0_5 = arith.constant 0 : index
    %6 = vector.load %arg4[%c0_4, %c0_5] : memref<1x32xf32, #tpu.memory_space<vmem>>, vector<1x32xf32>
    %7 = vector.broadcast %6 : vector<1x32xf32> to vector<16x32xf32>
    %8 = arith.addf %5, %7 : vector<16x32xf32>
    %c0_6 = arith.constant 0 : index
    %c0_7 = arith.constant 0 : index
    %9 = vector.load %arg7[%c0_6, %c0_7] : memref<16x32xf32, #tpu.memory_space<vmem>>, vector<16x32xf32>
    tpu.vector_store %arg7[%c0_6, %c0_7], %8 {strides = array<i32>} : memref<16x32xf32, #tpu.memory_space<vmem>>, vector<16x32xf32>,
    %c0_8 = arith.constant 0 : index
    %c0_9 = arith.constant 0 : index
    %10 = vector.load %arg3[%c0_8, %c0_9] : memref<32x32xbf16, #tpu.memory_space<vmem>>, vector<32x32xbf16>
    %c0_10 = arith.constant 0 : index
    %c0_11 = arith.constant 0 : index
    %11 = vector.load %arg6[%c0_10, %c0_11] : memref<8x32xf32, #tpu.memory_space<vmem>>, vector<8x32xf32>
    %c0_i32_12 = arith.constant 0 : i32
    %c8_i32 = arith.constant 8 : i32
    %12 = arith.muli %c0_i32_12, %c8_i32 : i32
    %13 = tpu.assume_multiple %12, 8 : i32
    %14 = arith.index_cast %13 : i32 to index
    %c0_13 = arith.constant 0 : index
    %15 = vector.load %arg7[%14, %c0_13] : memref<16x32xf32, #tpu.memory_space<vmem>>, vector<8x32xf32>
    %16 = arith.truncf %11 : vector<8x32xf32> to vector<8x32xbf16>
    %cst_14 = arith.constant dense<0.000000e+00> : vector<8x32xf32>
    %17 = tpu.matmul %16, %10, %cst_14 {dimension_numbers = #tpu.dot_dimension_numbers<[1], [0], [0], [1], [0, 0, 1, 1], [], []>} : vector<8x32xbf16>, vector<32x32xbf16>, vector<8x32xf32> -> vector<8x32xf32>
    %18 = arith.addf %15, %17 : vector<8x32xf32>
    %19 = math.tanh %18 : vector<8x32xf32>
    %20 = arith.index_cast %13 : i32 to index
    %c0_15 = arith.constant 0 : index
    %21 = vector.load %arg5[%20, %c0_15] : memref<16x32xf32, #tpu.memory_space<vmem>>, vector<8x32xf32>
    tpu.vector_store %arg5[%20, %c0_15], %19 {strides = array<i32>} : memref<16x32xf32, #tpu.memory_space<vmem>>, vector<8x32xf32>,
    %c1_i32 = arith.constant 1 : i32
    %c8_i32_16 = arith.constant 8 : i32
    %22 = arith.muli %c1_i32, %c8_i32_16 : i32
    %23 = tpu.assume_multiple %22, 8 : i32
    %24 = arith.index_cast %23 : i32 to index
    %c0_17 = arith.constant 0 : index
    %25 = vector.load %arg7[%24, %c0_17] : memref<16x32xf32, #tpu.memory_space<vmem>>, vector<8x32xf32>
    %26 = arith.truncf %19 : vector<8x32xf32> to vector<8x32xbf16>
    %cst_18 = arith.constant dense<0.000000e+00> : vector<8x32xf32>
    %27 = tpu.matmul %26, %10, %cst_18 {dimension_numbers = #tpu.dot_dimension_numbers<[1], [0], [0], [1], [0, 0, 1, 1], [], []>} : vector<8x32xbf16>, vector<32x32xbf16>, vector<8x32xf32> -> vector<8x32xf32>
    %28 = arith.addf %25, %27 : vector<8x32xf32>
    %29 = math.tanh %28 : vector<8x32xf32>
    %30 = arith.index_cast %23 : i32 to index
    %c0_19 = arith.constant 0 : index
    %31 = vector.load %arg5[%30, %c0_19] : memref<16x32xf32, #tpu.memory_space<vmem>>, vector<8x32xf32>
    tpu.vector_store %arg5[%30, %c0_19], %29 {strides = array<i32>} : memref<16x32xf32, #tpu.memory_space<vmem>>, vector<8x32xf32>,
    %c2_i32 = arith.constant 2 : i32
    %c0_20 = arith.constant 0 : index
    %c0_21 = arith.constant 0 : index
    %32 = vector.load %arg6[%c0_20, %c0_21] : memref<8x32xf32, #tpu.memory_space<vmem>>, vector<8x32xf32>
    tpu.vector_store %arg6[%c0_20, %c0_21], %29 {strides = array<i32>} : memref<8x32xf32, #tpu.memory_space<vmem>>, vector<8x32xf32>,
    return
  }
  func.func @transform_0(%arg0: i32) -> (i32, i32) {
    %c0_i32 = arith.constant 0 : i32
    %c0_i32_0 = arith.constant 0 : i32
    return %arg0, %c0_i32 : i32, i32
  }
  func.func @transform_1(%arg0: i32) -> (i32, i32) {
    %c0_i32 = arith.constant 0 : i32
    %c0_i32_0 = arith.constant 0 : i32
    %c0_i32_1 = arith.constant 0 : i32
    return %c0_i32, %c0_i32_0 : i32, i32
  }
  func.func @transform_2(%arg0: i32) -> (i32, i32) {
    %c0_i32 = arith.constant 0 : i32
    %c0_i32_0 = arith.constant 0 : i32
    %c0_i32_1 = arith.constant 0 : i32
    return %c0_i32, %c0_i32_0 : i32, i32
  }
  func.func @transform_3(%arg0: i32) -> (i32, i32) {
    %c0_i32 = arith.constant 0 : i32
    %c0_i32_0 = arith.constant 0 : i32
    %c0_i32_1 = arith.constant 0 : i32
    return %c0_i32, %c0_i32_0 : i32, i32
  }
  func.func @transform_4(%arg0: i32) -> (i32, i32) {
    %c0_i32 = arith.constant 0 : i32
    %c0_i32_0 = arith.constant 0 : i32
    return %arg0, %c0_i32 : i32, i32
  }
}

</mosaic_0001>

<llo_original>
// kernel: multi_drnn_with_dilations.5
$region0: #{multi_drnn_with_dilations.5}
  #allocation0 [shape = 'u32[]', space=smem, size = 0x4, offset = 0x4, fixed_abs, tag = 'smem constant byte address 0x4 - core index']
  #allocation1 [shape = 'u32[144,128]{1,0:T(1,128)}', space=vmem, size = 0x12000, scoped, tag = 'internal scratch']
  #allocation2 [shape = 'f32[8,32]{1,0:T(8,128)}', space=vmem, size = 0x1000, scoped, tag = 'scratch operand']
  #allocation3 [shape = 'f32[16,32]{1,0:T(8,128)}', space=vmem, size = 0x2000, scoped, tag = 'scratch operand']
  %s0 = inlined_call_operand.vmem [shape: bf16[16,32], index: 0, kind: input, shape index: {}]
  %s1 = inlined_call_operand.vmem [shape: bf16[32,32], index: 1, kind: input, shape index: {}]
  %s2 = inlined_call_operand.vmem [shape: bf16[32,32], index: 2, kind: input, shape index: {}]
  %s3 = inlined_call_operand.vmem [shape: f32[1,32], index: 3, kind: input, shape index: {}]
  %s4 = inlined_call_operand.hbm [shape: f32[16,32], index: 4, kind: output, shape index: {}]
  %s5 = sld [smem:[#allocation0]]
  $region30: #{multi_drnn_with_dilations.5} parent=0
    _
  %s7 = ssub.s32 1, %s5
  %s8 = scalar_select 0, %s7, %s5
  $region1: #{multi_drnn_with_dilations.5} parent=0
    #allocation4 [shape = 'u8[8192]{0}', space=vmem, size = 0x2000, scoped, tag = 'output window, operand 0, single buffered']
    #allocation5 [shape = 's32[1]{0}', space=sflag, size = 0x4, scoped, tag = 'scoped memory for multi_drnn_with_dilations.5']
    %9 = vsyncpa [#allocation5], 0
    // Predicated region
    $region2: #{multi_drnn_with_dilations.5} parent=1 // pred_check
      _
    $region3: #{multi_drnn_with_dilations.5} parent=1 // pred_check_branch
      %11 = sbr.rel (0) target = $region5
    $region4: #{multi_drnn_with_dilations.5} parent=1 // pred_region
      _
    $region5: #{multi_drnn_with_dilations.5} parent=1 // pred_fallthru
      _
    // Predicated region
    $region6: #{multi_drnn_with_dilations.5} parent=1 // pred_check
      _
    $region7: #{multi_drnn_with_dilations.5} parent=1 // pred_check_branch
      %13 = sbr.rel (0) target = $region9
    $region8: #{multi_drnn_with_dilations.5} parent=1 // pred_region
      _
    $region9: #{multi_drnn_with_dilations.5} parent=1 // pred_fallthru
      _
    // Predicated region
    $region10: #{multi_drnn_with_dilations.5} parent=1 // pred_check
      _
    $region11: #{multi_drnn_with_dilations.5} parent=1 // pred_check_branch
      %15 = sbr.rel (0) target = $region13
    $region12: #{multi_drnn_with_dilations.5} parent=1 // pred_region
      _
    $region13: #{multi_drnn_with_dilations.5} parent=1 // pred_fallthru
      _
    // Predicated region
    $region14: #{multi_drnn_with_dilations.5} parent=1 // pred_check
      _
    $region15: #{multi_drnn_with_dilations.5} parent=1 // pred_check_branch
      %17 = sbr.rel (0) target = $region17
    $region16: #{multi_drnn_with_dilations.5} parent=1 // pred_region
      _
    $region17: #{multi_drnn_with_dilations.5} parent=1 // pred_fallthru
      _
    %p19 = scmp.eq.s32.totalorder 0, 0
    // Predicated region
    $region18: #{multi_drnn_with_dilations.5} parent=1 // pred_check
      %p20 = pneg %p19
    $region19: #{multi_drnn_with_dilations.5} parent=1 // pred_check_branch
      %22 = sbr.rel (%p20) target = $region21
    $region20: #{multi_drnn_with_dilations.5} parent=1 // pred_region
      %vm23 = vcmask 261120
      %24 = vst.msk [vmem:[#allocation2] sm:$0xff] %vm23, 0.0
    $region21: #{multi_drnn_with_dilations.5} parent=1 // pred_fallthru
      _
    %v25 = vld [vmem:[%s0] sm:$0xf]
    %v26 = vld [vmem:[%s0 + $0x4] sm:$0xf]
    %v27 = vld [vmem:[%s1] sm:$0xf]
    %v28 = vld [vmem:[%s1 + $0x4] sm:$0xf]
    %v29 = vld [vmem:[%s1 + $0x8] sm:$0xf]
    %v30 = vld [vmem:[%s1 + $0xc] sm:$0xf]
    %v31 = vld [vmem:[%s3] sm:$0x1]
    %v33 = vlaneseq
    %v34 = vshrl.u32 %v33, 7
    %v35 = vsub.s32 0, %v34
    %v36 = vrot.slane %v31, %v35
    %v40 = vunpack.c.l.b16 %v25
    %v41 = vunpack.c.l.b16 %v26
    %v42 = vpack.c.b16 %v41, %v40
    %v47 = vunpack.c.l.b16 %v27
    %v48 = vunpack.c.l.b16 %v28
    %v49 = vunpack.c.l.b16 %v29
    %v50 = vunpack.c.l.b16 %v30
    %v51 = vpack.c.b16 %v48, %v47
    %v52 = vpack.c.b16 %v50, %v49
    %vm55 = vcmask 261120
    %v57 = vsel %vm55, %v42, 0
    %59 = vmatprep.subr.bf16.mxu0 0
    %60 = vmatpush1.bf16.msra.mxu0 0
    %61 = vmatprep.subr.bf16.mxu0 0
    %62 = vmatpush1.bf16.msra.mxu0 0
    %63 = vmatprep.subr.bf16.mxu0 0
    %64 = vmatpush1.bf16.msra.mxu0 0
    %65 = vmatprep.subr.bf16.mxu0 0
    %66 = vmatpush1.bf16.msra.mxu0 0
    %67 = vmatprep.subr.bf16.mxu0 0
    %68 = vmatpush1.bf16.msra.mxu0 0
    %69 = vmatprep.subr.bf16.mxu0 0
    %70 = vmatpush1.bf16.msra.mxu0 0
    %71 = vmatprep.subr.bf16.mxu0 0
    %72 = vmatpush1.bf16.msra.mxu0 %v52
    %73 = vmatprep.subr.bf16.mxu0 0
    %74 = vmatpush1.bf16.msra.mxu0 %v51
    %75 = vmatprep.subr.bf16.mxu0 0
    %76 = vmatpush2.bf16.msra.mxu0 0
    %77 = vmatprep.subr.bf16.mxu0 0
    %78 = vmatpush2.bf16.msra.mxu0 0
    %79 = vmatprep.subr.bf16.mxu0 0
    %80 = vmatpush2.bf16.msra.mxu0 0
    %81 = vmatprep.subr.bf16.mxu0 0
    %82 = vmatpush2.bf16.msra.mxu0 0
    %83 = vmatprep.subr.bf16.mxu0 0
    %84 = vmatpush2.bf16.msra.mxu0 0
    %85 = vmatprep.subr.bf16.mxu0 0
    %86 = vmatpush2.bf16.msra.mxu0 0
    %87 = vmatprep.subr.bf16.mxu0 0
    %88 = vmatpush2.bf16.msra.mxu0 0
    %89 = vmatprep.subr.bf16.mxu0 0
    %90 = vmatpush2.bf16.msra.mxu0 0
    %91 = vmatprep.mubr.bf16.mxu0 0
    %92 = vmatmul.mubr.bf16.gmra.mxu0 %v57
    %v93 = vpop.f32.mrf.mxu0
    %v94 = vadd.f32 %v36, %v93
    %v95 = vpop.f32.mrf.mxu0
    %v96 = vpop.f32.mrf.mxu0
    %v97 = vadd.f32 %v36, %v96
    %v98 = vpop.f32.mrf.mxu0
    %99 = vdwg.mxu0
    %100 = vst.msk [vmem:[#allocation3] sm:$0xff] %vm55, %v94
    %101 = vst.msk [vmem:[#allocation3 + $0x8] sm:$0xff] %vm55, %v97
    %v102 = vld [vmem:[%s2] sm:$0xf]
    %v103 = vld [vmem:[%s2 + $0x4] sm:$0xf]
    %v104 = vld [vmem:[%s2 + $0x8] sm:$0xf]
    %v105 = vld [vmem:[%s2 + $0xc] sm:$0xf]
    %v106 = vld [vmem:[#allocation2] sm:$0xff]
    %v107 = vld [vmem:[#allocation3] sm:$0xff]
    %v108 = vpack.c.bf16 %v106, %v106
    %v113 = vunpack.c.l.b16 %v102
    %v114 = vunpack.c.l.b16 %v103
    %v115 = vunpack.c.l.b16 %v104
    %v116 = vunpack.c.l.b16 %v105
    %v117 = vpack.c.b16 %v114, %v113
    %v118 = vpack.c.b16 %v116, %v115
    %v122 = vsel %vm55, %v108, 0
    %124 = vmatprep.subr.bf16.mxu0 0
    %125 = vmatpush1.bf16.msra.mxu0 0
    %126 = vmatprep.subr.bf16.mxu0 0
    %127 = vmatpush1.bf16.msra.mxu0 0
    %128 = vmatprep.subr.bf16.mxu0 0
    %129 = vmatpush1.bf16.msra.mxu0 0
    %130 = vmatprep.subr.bf16.mxu0 0
    %131 = vmatpush1.bf16.msra.mxu0 0
    %132 = vmatprep.subr.bf16.mxu0 0
    %133 = vmatpush1.bf16.msra.mxu0 0
    %134 = vmatprep.subr.bf16.mxu0 0
    %135 = vmatpush1.bf16.msra.mxu0 0
    %136 = vmatprep.subr.bf16.mxu0 0
    %137 = vmatpush1.bf16.msra.mxu0 %v118
    %138 = vmatprep.subr.bf16.mxu0 0
    %139 = vmatpush1.bf16.msra.mxu0 %v117
    %140 = vmatprep.subr.bf16.mxu0 0
    %141 = vmatpush2.bf16.msra.mxu0 0
    %142 = vmatprep.subr.bf16.mxu0 0
    %143 = vmatpush2.bf16.msra.mxu0 0
    %144 = vmatprep.subr.bf16.mxu0 0
    %145 = vmatpush2.bf16.msra.mxu0 0
    %146 = vmatprep.subr.bf16.mxu0 0
    %147 = vmatpush2.bf16.msra.mxu0 0
    %148 = vmatprep.subr.bf16.mxu0 0
    %149 = vmatpush2.bf16.msra.mxu0 0
    %150 = vmatprep.subr.bf16.mxu0 0
    %151 = vmatpush2.bf16.msra.mxu0 0
    %152 = vmatprep.subr.bf16.mxu0 0
    %153 = vmatpush2.bf16.msra.mxu0 0
    %154 = vmatprep.subr.bf16.mxu0 0
    %155 = vmatpush2.bf16.msra.mxu0 0
    %156 = vmatprep.mubr.bf16.mxu0 0
    %157 = vmatmul.mubr.bf16.gmra.mxu0 %v122
    %v158 = vpop.f32.mrf.mxu0
    %v159 = vadd.f32 0.0, %v158
    %v160 = vpop.f32.mrf.mxu0
    %v161 = vpop.f32.mrf.mxu0
    %v162 = vpop.f32.mrf.mxu0
    %163 = vdwg.mxu0
    %v164 = vadd.f32 %v107, %v159
    %v165 = vtanh.pop %v164
    %166 = vst.msk [vmem:[#allocation4] sm:$0xff] %vm55, %v165
    %s167 = scalar_lea.vmem [#allocation3], 8
    %v168 = vld [vmem:[%s167] sm:$0xff]
    %v169 = vpack.c.bf16 %v165, %v165
    %v171 = vsel %vm55, %v169, 0
    %173 = vmatprep.subr.bf16.mxu0 0
    %174 = vmatpush1.bf16.msra.mxu0 0
    %175 = vmatprep.subr.bf16.mxu0 0
    %176 = vmatpush1.bf16.msra.mxu0 0
    %177 = vmatprep.subr.bf16.mxu0 0
    %178 = vmatpush1.bf16.msra.mxu0 0
    %179 = vmatprep.subr.bf16.mxu0 0
    %180 = vmatpush1.bf16.msra.mxu0 0
    %181 = vmatprep.subr.bf16.mxu0 0
    %182 = vmatpush1.bf16.msra.mxu0 0
    %183 = vmatprep.subr.bf16.mxu0 0
    %184 = vmatpush1.bf16.msra.mxu0 0
    %185 = vmatprep.subr.bf16.mxu0 0
    %186 = vmatpush1.bf16.msra.mxu0 %v118
    %187 = vmatprep.subr.bf16.mxu0 0
    %188 = vmatpush1.bf16.msra.mxu0 %v117
    %189 = vmatprep.subr.bf16.mxu0 0
    %190 = vmatpush2.bf16.msra.mxu0 0
    %191 = vmatprep.subr.bf16.mxu0 0
    %192 = vmatpush2.bf16.msra.mxu0 0
    %193 = vmatprep.subr.bf16.mxu0 0
    %194 = vmatpush2.bf16.msra.mxu0 0
    %195 = vmatprep.subr.bf16.mxu0 0
    %196 = vmatpush2.bf16.msra.mxu0 0
    %197 = vmatprep.subr.bf16.mxu0 0
    %198 = vmatpush2.bf16.msra.mxu0 0
    %199 = vmatprep.subr.bf16.mxu0 0
    %200 = vmatpush2.bf16.msra.mxu0 0
    %201 = vmatprep.subr.bf16.mxu0 0
    %202 = vmatpush2.bf16.msra.mxu0 0
    %203 = vmatprep.subr.bf16.mxu0 0
    %204 = vmatpush2.bf16.msra.mxu0 0
    %205 = vmatprep.mubr.bf16.mxu0 0
    %206 = vmatmul.mubr.bf16.gmra.mxu0 %v171
    %v207 = vpop.f32.mrf.mxu0
    %v208 = vadd.f32 0.0, %v207
    %v209 = vpop.f32.mrf.mxu0
    %v210 = vpop.f32.mrf.mxu0
    %v211 = vpop.f32.mrf.mxu0
    %212 = vdwg.mxu0
    %v213 = vadd.f32 %v168, %v208
    %v214 = vtanh.pop %v213
    %s215 = scalar_lea.vmem [#allocation4], 8
    %216 = vst.msk [vmem:[%s215] sm:$0xff] %vm55, %v214
    %217 = vst.msk [vmem:[#allocation2] sm:$0xff] %vm55, %v214
    // Predicated region
    $region22: #{multi_drnn_with_dilations.5} parent=1 // pred_check
      _
    $region23: #{multi_drnn_with_dilations.5} parent=1 // pred_check_branch
      %219 = sbr.rel (0) target = $region25
    $region24: #{multi_drnn_with_dilations.5} parent=1 // pred_region
      %s221 = ssub.s32 256, 256
      %222 = vsyncadd [#allocation5], %s221
      %s223 = sshll.u32 [#allocation4], 4
      %s224 = int_to_ptr.vmem [resolvable:$true] %s223
      %229 = dma.vmem_to_hbm [thread:$0]  %s224, 256, %s4, [#allocation5], 128, 128, 8
    $region25: #{multi_drnn_with_dilations.5} parent=1 // pred_fallthru
      _
    // Predicated region
    $region26: #{multi_drnn_with_dilations.5} parent=1 // pred_check
      _
    $region27: #{multi_drnn_with_dilations.5} parent=1 // pred_check_branch
      %231 = sbr.rel (0) target = $region29
    $region28: #{multi_drnn_with_dilations.5} parent=1 // pred_region
      %232 = dma.done [#allocation5], 256
    $region29: #{multi_drnn_with_dilations.5} parent=1 // pred_fallthru
      _
    %233 = vsyncpa [#allocation5], 1

// kernel: multi_drnn_with_dilations.4
$region0: #{multi_drnn_with_dilations.4}
  #allocation0 [shape = 'u32[]', space=smem, size = 0x4, offset = 0x4, fixed_abs, tag = 'smem constant byte address 0x4 - core index']
  #allocation1 [shape = 'u32[144,128]{1,0:T(1,128)}', space=vmem, size = 0x12000, scoped, tag = 'internal scratch']
  #allocation2 [shape = 'f32[8,32]{1,0:T(8,128)}', space=vmem, size = 0x1000, scoped, tag = 'scratch operand']
  #allocation3 [shape = 'f32[32,32]{1,0:T(8,128)}', space=vmem, size = 0x4000, scoped, tag = 'scratch operand']
  %s0 = inlined_call_operand.vmem [shape: bf16[32,32], index: 0, kind: input, shape index: {}]
  %s1 = inlined_call_operand.vmem [shape: bf16[32,32], index: 1, kind: input, shape index: {}]
  %s2 = inlined_call_operand.vmem [shape: bf16[32,32], index: 2, kind: input, shape index: {}]
  %s3 = inlined_call_operand.vmem [shape: f32[1,32], index: 3, kind: input, shape index: {}]
  %s4 = inlined_call_operand.vmem [shape: f32[32,32], index: 4, kind: output, shape index: {}]
  %s5 = sld [smem:[#allocation0]]
  $region30: #{multi_drnn_with_dilations.4} parent=0
    _
  %s7 = ssub.s32 1, %s5
  %s8 = scalar_select 0, %s7, %s5
  // Predicated region
  $region2: #{multi_drnn_with_dilations.4} parent=0 // pred_check
    _
  $region3: #{multi_drnn_with_dilations.4} parent=0 // pred_check_branch
    %10 = sbr.rel (0) target = $region5
  $region4: #{multi_drnn_with_dilations.4} parent=0 // pred_region
    _
  $region5: #{multi_drnn_with_dilations.4} parent=0 // pred_fallthru
    _
  // Predicated region
  $region6: #{multi_drnn_with_dilations.4} parent=0 // pred_check
    _
  $region7: #{multi_drnn_with_dilations.4} parent=0 // pred_check_branch
    %12 = sbr.rel (0) target = $region9
  $region8: #{multi_drnn_with_dilations.4} parent=0 // pred_region
    _
  $region9: #{multi_drnn_with_dilations.4} parent=0 // pred_fallthru
    _
  // Predicated region
  $region10: #{multi_drnn_with_dilations.4} parent=0 // pred_check
    _
  $region11: #{multi_drnn_with_dilations.4} parent=0 // pred_check_branch
    %14 = sbr.rel (0) target = $region13
  $region12: #{multi_drnn_with_dilations.4} parent=0 // pred_region
    _
  $region13: #{multi_drnn_with_dilations.4} parent=0 // pred_fallthru
    _
  // Predicated region
  $region14: #{multi_drnn_with_dilations.4} parent=0 // pred_check
    _
  $region15: #{multi_drnn_with_dilations.4} parent=0 // pred_check_branch
    %16 = sbr.rel (0) target = $region17
  $region16: #{multi_drnn_with_dilations.4} parent=0 // pred_region
    _
  $region17: #{multi_drnn_with_dilations.4} parent=0 // pred_fallthru
    _
  %p18 = scmp.eq.s32.totalorder 0, 0
  // Predicated region
  $region18: #{multi_drnn_with_dilations.4} parent=0 // pred_check
    %p19 = pneg %p18
  $region19: #{multi_drnn_with_dilations.4} parent=0 // pred_check_branch
    %21 = sbr.rel (%p19) target = $region21
  $region20: #{multi_drnn_with_dilations.4} parent=0 // pred_region
    %vm22 = vcmask 261120
    %23 = vst.msk [vmem:[#allocation2] sm:$0xff] %vm22, 0.0
  $region21: #{multi_drnn_with_dilations.4} parent=0 // pred_fallthru
    _
  %v24 = vld [vmem:[%s0] sm:$0xf]
  %v25 = vld [vmem:[%s0 + $0x4] sm:$0xf]
  %v26 = vld [vmem:[%s0 + $0x8] sm:$0xf]
  %v27 = vld [vmem:[%s0 + $0xc] sm:$0xf]
  %v28 = vld [vmem:[%s1] sm:$0xf]
  %v29 = vld [vmem:[%s1 + $0x4] sm:$0xf]
  %v30 = vld [vmem:[%s1 + $0x8] sm:$0xf]
  %v31 = vld [vmem:[%s1 + $0xc] sm:$0xf]
  %v32 = vld [vmem:[%s3] sm:$0x1]
  %v34 = vlaneseq
  %v35 = vshrl.u32 %v34, 7
  %v36 = vsub.s32 0, %v35
  %v37 = vrot.slane %v32, %v36
  %v43 = vunpack.c.l.b16 %v24
  %v44 = vunpack.c.l.b16 %v25
  %v45 = vunpack.c.l.b16 %v26
  %v46 = vunpack.c.l.b16 %v27
  %v47 = vpack.c.b16 %v44, %v43
  %v48 = vpack.c.b16 %v46, %v45
  %v53 = vunpack.c.l.b16 %v28
  %v54 = vunpack.c.l.b16 %v29
  %v55 = vunpack.c.l.b16 %v30
  %v56 = vunpack.c.l.b16 %v31
  %v57 = vpack.c.b16 %v54, %v53
  %v58 = vpack.c.b16 %v56, %v55
  %vm61 = vcmask 261120
  %v63 = vsel %vm61, %v47, 0
  %v66 = vsel %vm61, %v48, 0
  %68 = vmatprep.subr.bf16.mxu0 0
  %69 = vmatpush1.bf16.msra.mxu0 0
  %70 = vmatprep.subr.bf16.mxu0 0
  %71 = vmatpush1.bf16.msra.mxu0 0
  %72 = vmatprep.subr.bf16.mxu0 0
  %73 = vmatpush1.bf16.msra.mxu0 0
  %74 = vmatprep.subr.bf16.mxu0 0
  %75 = vmatpush1.bf16.msra.mxu0 0
  %76 = vmatprep.subr.bf16.mxu0 0
  %77 = vmatpush1.bf16.msra.mxu0 0
  %78 = vmatprep.subr.bf16.mxu0 0
  %79 = vmatpush1.bf16.msra.mxu0 0
  %80 = vmatprep.subr.bf16.mxu0 0
  %81 = vmatpush1.bf16.msra.mxu0 %v58
  %82 = vmatprep.subr.bf16.mxu0 0
  %83 = vmatpush1.bf16.msra.mxu0 %v57
  %84 = vmatprep.subr.bf16.mxu0 0
  %85 = vmatpush2.bf16.msra.mxu0 0
  %86 = vmatprep.subr.bf16.mxu0 0
  %87 = vmatpush2.bf16.msra.mxu0 0
  %88 = vmatprep.subr.bf16.mxu0 0
  %89 = vmatpush2.bf16.msra.mxu0 0
  %90 = vmatprep.subr.bf16.mxu0 0
  %91 = vmatpush2.bf16.msra.mxu0 0
  %92 = vmatprep.subr.bf16.mxu0 0
  %93 = vmatpush2.bf16.msra.mxu0 0
  %94 = vmatprep.subr.bf16.mxu0 0
  %95 = vmatpush2.bf16.msra.mxu0 0
  %96 = vmatprep.subr.bf16.mxu0 0
  %97 = vmatpush2.bf16.msra.mxu0 0
  %98 = vmatprep.subr.bf16.mxu0 0
  %99 = vmatpush2.bf16.msra.mxu0 0
  %100 = vmatprep.mubr.bf16.mxu0 0
  %101 = vmatmul.mubr.bf16.gmra.mxu0 %v63
  %v102 = vpop.f32.mrf.mxu0
  %v103 = vadd.f32 %v37, %v102
  %v104 = vpop.f32.mrf.mxu0
  %v105 = vpop.f32.mrf.mxu0
  %v106 = vadd.f32 %v37, %v105
  %v107 = vpop.f32.mrf.mxu0
  %108 = vmatprep.mubr.bf16.mxu0 0
  %109 = vmatmul.mubr.bf16.gmra.mxu0 %v66
  %v110 = vpop.f32.mrf.mxu0
  %v111 = vadd.f32 %v37, %v110
  %v112 = vpop.f32.mrf.mxu0
  %v113 = vpop.f32.mrf.mxu0
  %v114 = vadd.f32 %v37, %v113
  %v115 = vpop.f32.mrf.mxu0
  %116 = vdwg.mxu0
  %117 = vst.msk [vmem:[#allocation3] sm:$0xff] %vm61, %v103
  %118 = vst.msk [vmem:[#allocation3 + $0x8] sm:$0xff] %vm61, %v106
  %119 = vst.msk [vmem:[#allocation3 + $0x10] sm:$0xff] %vm61, %v111
  %120 = vst.msk [vmem:[#allocation3 + $0x18] sm:$0xff] %vm61, %v114
  %v121 = vld [vmem:[%s2] sm:$0xf]
  %v122 = vld [vmem:[%s2 + $0x4] sm:$0xf]
  %v123 = vld [vmem:[%s2 + $0x8] sm:$0xf]
  %v124 = vld [vmem:[%s2 + $0xc] sm:$0xf]
  %v125 = vld [vmem:[#allocation2] sm:$0xff]
  %v126 = vld [vmem:[#allocation3] sm:$0xff]
  %v127 = vpack.c.bf16 %v125, %v125
  %v132 = vunpack.c.l.b16 %v121
  %v133 = vunpack.c.l.b16 %v122
  %v134 = vunpack.c.l.b16 %v123
  %v135 = vunpack.c.l.b16 %v124
  %v136 = vpack.c.b16 %v133, %v132
  %v137 = vpack.c.b16 %v135, %v134
  %v141 = vsel %vm61, %v127, 0
  %143 = vmatprep.subr.bf16.mxu0 0
  %144 = vmatpush1.bf16.msra.mxu0 0
  %145 = vmatprep.subr.bf16.mxu0 0
  %146 = vmatpush1.bf16.msra.mxu0 0
  %147 = vmatprep.subr.bf16.mxu0 0
  %148 = vmatpush1.bf16.msra.mxu0 0
  %149 = vmatprep.subr.bf16.mxu0 0
  %150 = vmatpush1.bf16.msra.mxu0 0
  %151 = vmatprep.subr.bf16.mxu0 0
  %152 = vmatpush1.bf16.msra.mxu0 0
  %153 = vmatprep.subr.bf16.mxu0 0
  %154 = vmatpush1.bf16.msra.mxu0 0
  %155 = vmatprep.subr.bf16.mxu0 0
  %156 = vmatpush1.bf16.msra.mxu0 %v137
  %157 = vmatprep.subr.bf16.mxu0 0
  %158 = vmatpush1.bf16.msra.mxu0 %v136
  %159 = vmatprep.subr.bf16.mxu0 0
  %160 = vmatpush2.bf16.msra.mxu0 0
  %161 = vmatprep.subr.bf16.mxu0 0
  %162 = vmatpush2.bf16.msra.mxu0 0
  %163 = vmatprep.subr.bf16.mxu0 0
  %164 = vmatpush2.bf16.msra.mxu0 0
  %165 = vmatprep.subr.bf16.mxu0 0
  %166 = vmatpush2.bf16.msra.mxu0 0
  %167 = vmatprep.subr.bf16.mxu0 0
  %168 = vmatpush2.bf16.msra.mxu0 0
  %169 = vmatprep.subr.bf16.mxu0 0
  %170 = vmatpush2.bf16.msra.mxu0 0
  %171 = vmatprep.subr.bf16.mxu0 0
  %172 = vmatpush2.bf16.msra.mxu0 0
  %173 = vmatprep.subr.bf16.mxu0 0
  %174 = vmatpush2.bf16.msra.mxu0 0
  %175 = vmatprep.mubr.bf16.mxu0 0
  %176 = vmatmul.mubr.bf16.gmra.mxu0 %v141
  %v177 = vpop.f32.mrf.mxu0
  %v178 = vadd.f32 0.0, %v177
  %v179 = vpop.f32.mrf.mxu0
  %v180 = vpop.f32.mrf.mxu0
  %v181 = vpop.f32.mrf.mxu0
  %182 = vdwg.mxu0
  %v183 = vadd.f32 %v126, %v178
  %v184 = vtanh.pop %v183
  %185 = vst.msk [vmem:[%s4] sm:$0xff] %vm61, %v184
  %s186 = scalar_lea.vmem [#allocation3], 8
  %v187 = vld [vmem:[%s186] sm:$0xff]
  %v188 = vpack.c.bf16 %v184, %v184
  %v190 = vsel %vm61, %v188, 0
  %192 = vmatprep.subr.bf16.mxu0 0
  %193 = vmatpush1.bf16.msra.mxu0 0
  %194 = vmatprep.subr.bf16.mxu0 0
  %195 = vmatpush1.bf16.msra.mxu0 0
  %196 = vmatprep.subr.bf16.mxu0 0
  %197 = vmatpush1.bf16.msra.mxu0 0
  %198 = vmatprep.subr.bf16.mxu0 0
  %199 = vmatpush1.bf16.msra.mxu0 0
  %200 = vmatprep.subr.bf16.mxu0 0
  %201 = vmatpush1.bf16.msra.mxu0 0
  %202 = vmatprep.subr.bf16.mxu0 0
  %203 = vmatpush1.bf16.msra.mxu0 0
  %204 = vmatprep.subr.bf16.mxu0 0
  %205 = vmatpush1.bf16.msra.mxu0 %v137
  %206 = vmatprep.subr.bf16.mxu0 0
  %207 = vmatpush1.bf16.msra.mxu0 %v136
  %208 = vmatprep.subr.bf16.mxu0 0
  %209 = vmatpush2.bf16.msra.mxu0 0
  %210 = vmatprep.subr.bf16.mxu0 0
  %211 = vmatpush2.bf16.msra.mxu0 0
  %212 = vmatprep.subr.bf16.mxu0 0
  %213 = vmatpush2.bf16.msra.mxu0 0
  %214 = vmatprep.subr.bf16.mxu0 0
  %215 = vmatpush2.bf16.msra.mxu0 0
  %216 = vmatprep.subr.bf16.mxu0 0
  %217 = vmatpush2.bf16.msra.mxu0 0
  %218 = vmatprep.subr.bf16.mxu0 0
  %219 = vmatpush2.bf16.msra.mxu0 0
  %220 = vmatprep.subr.bf16.mxu0 0
  %221 = vmatpush2.bf16.msra.mxu0 0
  %222 = vmatprep.subr.bf16.mxu0 0
  %223 = vmatpush2.bf16.msra.mxu0 0
  %224 = vmatprep.mubr.bf16.mxu0 0
  %225 = vmatmul.mubr.bf16.gmra.mxu0 %v190
  %v226 = vpop.f32.mrf.mxu0
  %v227 = vadd.f32 0.0, %v226
  %v228 = vpop.f32.mrf.mxu0
  %v229 = vpop.f32.mrf.mxu0
  %v230 = vpop.f32.mrf.mxu0
  %231 = vdwg.mxu0
  %v232 = vadd.f32 %v187, %v227
  %v233 = vtanh.pop %v232
  %s234 = scalar_lea.vmem %s4, 8
  %235 = vst.msk [vmem:[%s234] sm:$0xff] %vm61, %v233
  %s236 = scalar_lea.vmem [#allocation3], 16
  %v237 = vld [vmem:[%s236] sm:$0xff]
  %v238 = vpack.c.bf16 %v233, %v233
  %v240 = vsel %vm61, %v238, 0
  %242 = vmatprep.subr.bf16.mxu0 0
  %243 = vmatpush1.bf16.msra.mxu0 0
  %244 = vmatprep.subr.bf16.mxu0 0
  %245 = vmatpush1.bf16.msra.mxu0 0
  %246 = vmatprep.subr.bf16.mxu0 0
  %247 = vmatpush1.bf16.msra.mxu0 0
  %248 = vmatprep.subr.bf16.mxu0 0
  %249 = vmatpush1.bf16.msra.mxu0 0
  %250 = vmatprep.subr.bf16.mxu0 0
  %251 = vmatpush1.bf16.msra.mxu0 0
  %252 = vmatprep.subr.bf16.mxu0 0
  %253 = vmatpush1.bf16.msra.mxu0 0
  %254 = vmatprep.subr.bf16.mxu0 0
  %255 = vmatpush1.bf16.msra.mxu0 %v137
  %256 = vmatprep.subr.bf16.mxu0 0
  %257 = vmatpush1.bf16.msra.mxu0 %v136
  %258 = vmatprep.subr.bf16.mxu0 0
  %259 = vmatpush2.bf16.msra.mxu0 0
  %260 = vmatprep.subr.bf16.mxu0 0
  %261 = vmatpush2.bf16.msra.mxu0 0
  %262 = vmatprep.subr.bf16.mxu0 0
  %263 = vmatpush2.bf16.msra.mxu0 0
  %264 = vmatprep.subr.bf16.mxu0 0
  %265 = vmatpush2.bf16.msra.mxu0 0
  %266 = vmatprep.subr.bf16.mxu0 0
  %267 = vmatpush2.bf16.msra.mxu0 0
  %268 = vmatprep.subr.bf16.mxu0 0
  %269 = vmatpush2.bf16.msra.mxu0 0
  %270 = vmatprep.subr.bf16.mxu0 0
  %271 = vmatpush2.bf16.msra.mxu0 0
  %272 = vmatprep.subr.bf16.mxu0 0
  %273 = vmatpush2.bf16.msra.mxu0 0
  %274 = vmatprep.mubr.bf16.mxu0 0
  %275 = vmatmul.mubr.bf16.gmra.mxu0 %v240
  %v276 = vpop.f32.mrf.mxu0
  %v277 = vadd.f32 0.0, %v276
  %v278 = vpop.f32.mrf.mxu0
  %v279 = vpop.f32.mrf.mxu0
  %v280 = vpop.f32.mrf.mxu0
  %281 = vdwg.mxu0
  %v282 = vadd.f32 %v237, %v277
  %v283 = vtanh.pop %v282
  %s284 = scalar_lea.vmem %s4, 16
  %285 = vst.msk [vmem:[%s284] sm:$0xff] %vm61, %v283
  %s286 = scalar_lea.vmem [#allocation3], 24
  %v287 = vld [vmem:[%s286] sm:$0xff]
  %v288 = vpack.c.bf16 %v283, %v283
  %v290 = vsel %vm61, %v288, 0
  %292 = vmatprep.subr.bf16.mxu0 0
  %293 = vmatpush1.bf16.msra.mxu0 0
  %294 = vmatprep.subr.bf16.mxu0 0
  %295 = vmatpush1.bf16.msra.mxu0 0
  %296 = vmatprep.subr.bf16.mxu0 0
  %297 = vmatpush1.bf16.msra.mxu0 0
  %298 = vmatprep.subr.bf16.mxu0 0
  %299 = vmatpush1.bf16.msra.mxu0 0
  %300 = vmatprep.subr.bf16.mxu0 0
  %301 = vmatpush1.bf16.msra.mxu0 0
  %302 = vmatprep.subr.bf16.mxu0 0
  %303 = vmatpush1.bf16.msra.mxu0 0
  %304 = vmatprep.subr.bf16.mxu0 0
  %305 = vmatpush1.bf16.msra.mxu0 %v137
  %306 = vmatprep.subr.bf16.mxu0 0
  %307 = vmatpush1.bf16.msra.mxu0 %v136
  %308 = vmatprep.subr.bf16.mxu0 0
  %309 = vmatpush2.bf16.msra.mxu0 0
  %310 = vmatprep.subr.bf16.mxu0 0
  %311 = vmatpush2.bf16.msra.mxu0 0
  %312 = vmatprep.subr.bf16.mxu0 0
  %313 = vmatpush2.bf16.msra.mxu0 0
  %314 = vmatprep.subr.bf16.mxu0 0
  %315 = vmatpush2.bf16.msra.mxu0 0
  %316 = vmatprep.subr.bf16.mxu0 0
  %317 = vmatpush2.bf16.msra.mxu0 0
  %318 = vmatprep.subr.bf16.mxu0 0
  %319 = vmatpush2.bf16.msra.mxu0 0
  %320 = vmatprep.subr.bf16.mxu0 0
  %321 = vmatpush2.bf16.msra.mxu0 0
  %322 = vmatprep.subr.bf16.mxu0 0
  %323 = vmatpush2.bf16.msra.mxu0 0
  %324 = vmatprep.mubr.bf16.mxu0 0
  %325 = vmatmul.mubr.bf16.gmra.mxu0 %v290
  %v326 = vpop.f32.mrf.mxu0
  %v327 = vadd.f32 0.0, %v326
  %v328 = vpop.f32.mrf.mxu0
  %v329 = vpop.f32.mrf.mxu0
  %v330 = vpop.f32.mrf.mxu0
  %331 = vdwg.mxu0
  %v332 = vadd.f32 %v287, %v327
  %v333 = vtanh.pop %v332
  %s334 = scalar_lea.vmem %s4, 24
  %335 = vst.msk [vmem:[%s334] sm:$0xff] %vm61, %v333
  %336 = vst.msk [vmem:[#allocation2] sm:$0xff] %vm61, %v333
  // Predicated region
  $region22: #{multi_drnn_with_dilations.4} parent=0 // pred_check
    _
  $region23: #{multi_drnn_with_dilations.4} parent=0 // pred_check_branch
    %338 = sbr.rel (0) target = $region25
  $region24: #{multi_drnn_with_dilations.4} parent=0 // pred_region
    _
  $region25: #{multi_drnn_with_dilations.4} parent=0 // pred_fallthru
    _
  // Predicated region
  $region26: #{multi_drnn_with_dilations.4} parent=0 // pred_check
    _
  $region27: #{multi_drnn_with_dilations.4} parent=0 // pred_check_branch
    %340 = sbr.rel (0) target = $region29
  $region28: #{multi_drnn_with_dilations.4} parent=0 // pred_region
    _
  $region29: #{multi_drnn_with_dilations.4} parent=0 // pred_fallthru
    _

// kernel: multi_drnn_with_dilations.3
$region0: #{multi_drnn_with_dilations.3}
  #allocation0 [shape = 'u32[]', space=smem, size = 0x4, offset = 0x4, fixed_abs, tag = 'smem constant byte address 0x4 - core index']
  #allocation1 [shape = 'u32[144,128]{1,0:T(1,128)}', space=vmem, size = 0x12000, scoped, tag = 'internal scratch']
  #allocation2 [shape = 'f32[8,32]{1,0:T(8,128)}', space=vmem, size = 0x1000, scoped, tag = 'scratch operand']
  #allocation3 [shape = 'f32[64,32]{1,0:T(8,128)}', space=vmem, size = 0x8000, scoped, tag = 'scratch operand']
  %s0 = inlined_call_operand.vmem [shape: bf16[64,4], index: 0, kind: input, shape index: {}]
  %s1 = inlined_call_operand.vmem [shape: bf16[4,32], index: 1, kind: input, shape index: {}]
  %s2 = inlined_call_operand.vmem [shape: bf16[32,32], index: 2, kind: input, shape index: {}]
  %s3 = inlined_call_operand.vmem [shape: f32[1,32], index: 3, kind: input, shape index: {}]
  %s4 = inlined_call_operand.vmem [shape: f32[64,32], index: 4, kind: output, shape index: {}]
  %s5 = sld [smem:[#allocation0]]
  $region30: #{multi_drnn_with_dilations.3} parent=0
    _
  %s7 = ssub.s32 1, %s5
  %s8 = scalar_select 0, %s7, %s5
  // Predicated region
  $region2: #{multi_drnn_with_dilations.3} parent=0 // pred_check
    _
  $region3: #{multi_drnn_with_dilations.3} parent=0 // pred_check_branch
    %10 = sbr.rel (0) target = $region5
  $region4: #{multi_drnn_with_dilations.3} parent=0 // pred_region
    _
  $region5: #{multi_drnn_with_dilations.3} parent=0 // pred_fallthru
    _
  // Predicated region
  $region6: #{multi_drnn_with_dilations.3} parent=0 // pred_check
    _
  $region7: #{multi_drnn_with_dilations.3} parent=0 // pred_check_branch
    %12 = sbr.rel (0) target = $region9
  $region8: #{multi_drnn_with_dilations.3} parent=0 // pred_region
    _
  $region9: #{multi_drnn_with_dilations.3} parent=0 // pred_fallthru
    _
  // Predicated region
  $region10: #{multi_drnn_with_dilations.3} parent=0 // pred_check
    _
  $region11: #{multi_drnn_with_dilations.3} parent=0 // pred_check_branch
    %14 = sbr.rel (0) target = $region13
  $region12: #{multi_drnn_with_dilations.3} parent=0 // pred_region
    _
  $region13: #{multi_drnn_with_dilations.3} parent=0 // pred_fallthru
    _
  // Predicated region
  $region14: #{multi_drnn_with_dilations.3} parent=0 // pred_check
    _
  $region15: #{multi_drnn_with_dilations.3} parent=0 // pred_check_branch
    %16 = sbr.rel (0) target = $region17
  $region16: #{multi_drnn_with_dilations.3} parent=0 // pred_region
    _
  $region17: #{multi_drnn_with_dilations.3} parent=0 // pred_fallthru
    _
  %p18 = scmp.eq.s32.totalorder 0, 0
  // Predicated region
  $region18: #{multi_drnn_with_dilations.3} parent=0 // pred_check
    %p19 = pneg %p18
  $region19: #{multi_drnn_with_dilations.3} parent=0 // pred_check_branch
    %21 = sbr.rel (%p19) target = $region21
  $region20: #{multi_drnn_with_dilations.3} parent=0 // pred_region
    %vm22 = vcmask 261120
    %23 = vst.msk [vmem:[#allocation2] sm:$0xff] %vm22, 0.0
  $region21: #{multi_drnn_with_dilations.3} parent=0 // pred_fallthru
    _
  %v24 = vld [vmem:[%s0] sm:$0xf]
  %v25 = vld [vmem:[%s0 + $0x4] sm:$0xf]
  %v26 = vld [vmem:[%s0 + $0x8] sm:$0xf]
  %v27 = vld [vmem:[%s0 + $0xc] sm:$0xf]
  %v28 = vld [vmem:[%s0 + $0x10] sm:$0xf]
  %v29 = vld [vmem:[%s0 + $0x14] sm:$0xf]
  %v30 = vld [vmem:[%s0 + $0x18] sm:$0xf]
  %v31 = vld [vmem:[%s0 + $0x1c] sm:$0xf]
  %v32 = vld [vmem:[%s1] sm:$0x3]
  %v33 = vld [vmem:[%s3] sm:$0x1]
  %v35 = vlaneseq
  %v36 = vshrl.u32 %v35, 7
  %v37 = vsub.s32 0, %v36
  %v38 = vrot.slane %v33, %v37
  %v48 = vunpack.c.l.b16 %v24
  %v49 = vunpack.c.l.b16 %v25
  %v50 = vunpack.c.l.b16 %v26
  %v51 = vunpack.c.l.b16 %v27
  %v52 = vunpack.c.l.b16 %v28
  %v53 = vunpack.c.l.b16 %v29
  %v54 = vunpack.c.l.b16 %v30
  %v55 = vunpack.c.l.b16 %v31
  %v56 = vpack.c.b16 %v49, %v48
  %v57 = vpack.c.b16 %v51, %v50
  %v58 = vpack.c.b16 %v53, %v52
  %v59 = vpack.c.b16 %v55, %v54
  %vm60 = vcmask 31744
  %v62 = vsel %vm60, %v56, 0
  %v65 = vsel %vm60, %v57, 0
  %v68 = vsel %vm60, %v58, 0
  %v71 = vsel %vm60, %v59, 0
  %vm73 = vcmask 1041408
  %v75 = vsel %vm73, %v32, 0
  %77 = vmatprep.subr.bf16.mxu0 0
  %78 = vmatpush1.bf16.msra.mxu0 0
  %79 = vmatprep.subr.bf16.mxu0 0
  %80 = vmatpush1.bf16.msra.mxu0 0
  %81 = vmatprep.subr.bf16.mxu0 0
  %82 = vmatpush1.bf16.msra.mxu0 0
  %83 = vmatprep.subr.bf16.mxu0 0
  %84 = vmatpush1.bf16.msra.mxu0 0
  %85 = vmatprep.subr.bf16.mxu0 0
  %86 = vmatpush1.bf16.msra.mxu0 0
  %87 = vmatprep.subr.bf16.mxu0 0
  %88 = vmatpush1.bf16.msra.mxu0 0
  %89 = vmatprep.subr.bf16.mxu0 0
  %90 = vmatpush1.bf16.msra.mxu0 0
  %91 = vmatprep.subr.bf16.mxu0 0
  %92 = vmatpush1.bf16.msra.mxu0 %v75
  %93 = vmatprep.subr.bf16.mxu0 0
  %94 = vmatpush2.bf16.msra.mxu0 0
  %95 = vmatprep.subr.bf16.mxu0 0
  %96 = vmatpush2.bf16.msra.mxu0 0
  %97 = vmatprep.subr.bf16.mxu0 0
  %98 = vmatpush2.bf16.msra.mxu0 0
  %99 = vmatprep.subr.bf16.mxu0 0
  %100 = vmatpush2.bf16.msra.mxu0 0
  %101 = vmatprep.subr.bf16.mxu0 0
  %102 = vmatpush2.bf16.msra.mxu0 0
  %103 = vmatprep.subr.bf16.mxu0 0
  %104 = vmatpush2.bf16.msra.mxu0 0
  %105 = vmatprep.subr.bf16.mxu0 0
  %106 = vmatpush2.bf16.msra.mxu0 0
  %107 = vmatprep.subr.bf16.mxu0 0
  %108 = vmatpush2.bf16.msra.mxu0 0
  %109 = vmatprep.mubr.bf16.mxu0 0
  %110 = vmatmul.mubr.bf16.gmra.mxu0 %v62
  %v111 = vpop.f32.mrf.mxu0
  %v112 = vadd.f32 %v38, %v111
  %v113 = vpop.f32.mrf.mxu0
  %v114 = vpop.f32.mrf.mxu0
  %v115 = vadd.f32 %v38, %v114
  %v116 = vpop.f32.mrf.mxu0
  %117 = vmatprep.mubr.bf16.mxu0 0
  %118 = vmatmul.mubr.bf16.gmra.mxu0 %v65
  %v119 = vpop.f32.mrf.mxu0
  %v120 = vadd.f32 %v38, %v119
  %v121 = vpop.f32.mrf.mxu0
  %v122 = vpop.f32.mrf.mxu0
  %v123 = vadd.f32 %v38, %v122
  %v124 = vpop.f32.mrf.mxu0
  %125 = vmatprep.mubr.bf16.mxu0 0
  %126 = vmatmul.mubr.bf16.gmra.mxu0 %v68
  %v127 = vpop.f32.mrf.mxu0
  %v128 = vadd.f32 %v38, %v127
  %v129 = vpop.f32.mrf.mxu0
  %v130 = vpop.f32.mrf.mxu0
  %v131 = vadd.f32 %v38, %v130
  %v132 = vpop.f32.mrf.mxu0
  %133 = vmatprep.mubr.bf16.mxu0 0
  %134 = vmatmul.mubr.bf16.gmra.mxu0 %v71
  %v135 = vpop.f32.mrf.mxu0
  %v136 = vadd.f32 %v38, %v135
  %v137 = vpop.f32.mrf.mxu0
  %v138 = vpop.f32.mrf.mxu0
  %v139 = vadd.f32 %v38, %v138
  %v140 = vpop.f32.mrf.mxu0
  %141 = vdwg.mxu0
  %vm142 = vcmask 261120
  %143 = vst.msk [vmem:[#allocation3] sm:$0xff] %vm142, %v112
  %144 = vst.msk [vmem:[#allocation3 + $0x8] sm:$0xff] %vm142, %v115
  %145 = vst.msk [vmem:[#allocation3 + $0x10] sm:$0xff] %vm142, %v120
  %146 = vst.msk [vmem:[#allocation3 + $0x18] sm:$0xff] %vm142, %v123
  %147 = vst.msk [vmem:[#allocation3 + $0x20] sm:$0xff] %vm142, %v128
  %148 = vst.msk [vmem:[#allocation3 + $0x28] sm:$0xff] %vm142, %v131
  %149 = vst.msk [vmem:[#allocation3 + $0x30] sm:$0xff] %vm142, %v136
  %150 = vst.msk [vmem:[#allocation3 + $0x38] sm:$0xff] %vm142, %v139
  %v151 = vld [vmem:[%s2] sm:$0xf]
  %v152 = vld [vmem:[%s2 + $0x4] sm:$0xf]
  %v153 = vld [vmem:[%s2 + $0x8] sm:$0xf]
  %v154 = vld [vmem:[%s2 + $0xc] sm:$0xf]
  %v155 = vld [vmem:[#allocation2] sm:$0xff]
  %v156 = vld [vmem:[#allocation3] sm:$0xff]
  %v157 = vpack.c.bf16 %v155, %v155
  %v162 = vunpack.c.l.b16 %v151
  %v163 = vunpack.c.l.b16 %v152
  %v164 = vunpack.c.l.b16 %v153
  %v165 = vunpack.c.l.b16 %v154
  %v166 = vpack.c.b16 %v163, %v162
  %v167 = vpack.c.b16 %v165, %v164
  %v171 = vsel %vm142, %v157, 0
  %173 = vmatprep.subr.bf16.mxu0 0
  %174 = vmatpush1.bf16.msra.mxu0 0
  %175 = vmatprep.subr.bf16.mxu0 0
  %176 = vmatpush1.bf16.msra.mxu0 0
  %177 = vmatprep.subr.bf16.mxu0 0
  %178 = vmatpush1.bf16.msra.mxu0 0
  %179 = vmatprep.subr.bf16.mxu0 0
  %180 = vmatpush1.bf16.msra.mxu0 0
  %181 = vmatprep.subr.bf16.mxu0 0
  %182 = vmatpush1.bf16.msra.mxu0 0
  %183 = vmatprep.subr.bf16.mxu0 0
  %184 = vmatpush1.bf16.msra.mxu0 0
  %185 = vmatprep.subr.bf16.mxu0 0
  %186 = vmatpush1.bf16.msra.mxu0 %v167
  %187 = vmatprep.subr.bf16.mxu0 0
  %188 = vmatpush1.bf16.msra.mxu0 %v166
  %189 = vmatprep.subr.bf16.mxu0 0
  %190 = vmatpush2.bf16.msra.mxu0 0
  %191 = vmatprep.subr.bf16.mxu0 0
  %192 = vmatpush2.bf16.msra.mxu0 0
  %193 = vmatprep.subr.bf16.mxu0 0
  %194 = vmatpush2.bf16.msra.mxu0 0
  %195 = vmatprep.subr.bf16.mxu0 0
  %196 = vmatpush2.bf16.msra.mxu0 0
  %197 = vmatprep.subr.bf16.mxu0 0
  %198 = vmatpush2.bf16.msra.mxu0 0
  %199 = vmatprep.subr.bf16.mxu0 0
  %200 = vmatpush2.bf16.msra.mxu0 0
  %201 = vmatprep.subr.bf16.mxu0 0
  %202 = vmatpush2.bf16.msra.mxu0 0
  %203 = vmatprep.subr.bf16.mxu0 0
  %204 = vmatpush2.bf16.msra.mxu0 0
  %205 = vmatprep.mubr.bf16.mxu0 0
  %206 = vmatmul.mubr.bf16.gmra.mxu0 %v171
  %v207 = vpop.f32.mrf.mxu0
  %v208 = vadd.f32 0.0, %v207
  %v209 = vpop.f32.mrf.mxu0
  %v210 = vpop.f32.mrf.mxu0
  %v211 = vpop.f32.mrf.mxu0
  %212 = vdwg.mxu0
  %v213 = vadd.f32 %v156, %v208
  %v214 = vtanh.pop %v213
  %215 = vst.msk [vmem:[%s4] sm:$0xff] %vm142, %v214
  %s216 = scalar_lea.vmem [#allocation3], 8
  %v217 = vld [vmem:[%s216] sm:$0xff]
  %v218 = vpack.c.bf16 %v214, %v214
  %v220 = vsel %vm142, %v218, 0
  %222 = vmatprep.subr.bf16.mxu0 0
  %223 = vmatpush1.bf16.msra.mxu0 0
  %224 = vmatprep.subr.bf16.mxu0 0
  %225 = vmatpush1.bf16.msra.mxu0 0
  %226 = vmatprep.subr.bf16.mxu0 0
  %227 = vmatpush1.bf16.msra.mxu0 0
  %228 = vmatprep.subr.bf16.mxu0 0
  %229 = vmatpush1.bf16.msra.mxu0 0
  %230 = vmatprep.subr.bf16.mxu0 0
  %231 = vmatpush1.bf16.msra.mxu0 0
  %232 = vmatprep.subr.bf16.mxu0 0
  %233 = vmatpush1.bf16.msra.mxu0 0
  %234 = vmatprep.subr.bf16.mxu0 0
  %235 = vmatpush1.bf16.msra.mxu0 %v167
  %236 = vmatprep.subr.bf16.mxu0 0
  %237 = vmatpush1.bf16.msra.mxu0 %v166
  %238 = vmatprep.subr.bf16.mxu0 0
  %239 = vmatpush2.bf16.msra.mxu0 0
  %240 = vmatprep.subr.bf16.mxu0 0
  %241 = vmatpush2.bf16.msra.mxu0 0
  %242 = vmatprep.subr.bf16.mxu0 0
  %243 = vmatpush2.bf16.msra.mxu0 0
  %244 = vmatprep.subr.bf16.mxu0 0
  %245 = vmatpush2.bf16.msra.mxu0 0
  %246 = vmatprep.subr.bf16.mxu0 0
  %247 = vmatpush2.bf16.msra.mxu0 0
  %248 = vmatprep.subr.bf16.mxu0 0
  %249 = vmatpush2.bf16.msra.mxu0 0
  %250 = vmatprep.subr.bf16.mxu0 0
  %251 = vmatpush2.bf16.msra.mxu0 0
  %252 = vmatprep.subr.bf16.mxu0 0
  %253 = vmatpush2.bf16.msra.mxu0 0
  %254 = vmatprep.mubr.bf16.mxu0 0
  %255 = vmatmul.mubr.bf16.gmra.mxu0 %v220
  %v256 = vpop.f32.mrf.mxu0
  %v257 = vadd.f32 0.0, %v256
  %v258 = vpop.f32.mrf.mxu0
  %v259 = vpop.f32.mrf.mxu0
  %v260 = vpop.f32.mrf.mxu0
  %261 = vdwg.mxu0
  %v262 = vadd.f32 %v217, %v257
  %v263 = vtanh.pop %v262
  %s264 = scalar_lea.vmem %s4, 8
  %265 = vst.msk [vmem:[%s264] sm:$0xff] %vm142, %v263
  %s266 = scalar_lea.vmem [#allocation3], 16
  %v267 = vld [vmem:[%s266] sm:$0xff]
  %v268 = vpack.c.bf16 %v263, %v263
  %v270 = vsel %vm142, %v268, 0
  %272 = vmatprep.subr.bf16.mxu0 0
  %273 = vmatpush1.bf16.msra.mxu0 0
  %274 = vmatprep.subr.bf16.mxu0 0
  %275 = vmatpush1.bf16.msra.mxu0 0
  %276 = vmatprep.subr.bf16.mxu0 0
  %277 = vmatpush1.bf16.msra.mxu0 0
  %278 = vmatprep.subr.bf16.mxu0 0
  %279 = vmatpush1.bf16.msra.mxu0 0
  %280 = vmatprep.subr.bf16.mxu0 0
  %281 = vmatpush1.bf16.msra.mxu0 0
  %282 = vmatprep.subr.bf16.mxu0 0
  %283 = vmatpush1.bf16.msra.mxu0 0
  %284 = vmatprep.subr.bf16.mxu0 0
  %285 = vmatpush1.bf16.msra.mxu0 %v167
  %286 = vmatprep.subr.bf16.mxu0 0
  %287 = vmatpush1.bf16.msra.mxu0 %v166
  %288 = vmatprep.subr.bf16.mxu0 0
  %289 = vmatpush2.bf16.msra.mxu0 0
  %290 = vmatprep.subr.bf16.mxu0 0
  %291 = vmatpush2.bf16.msra.mxu0 0
  %292 = vmatprep.subr.bf16.mxu0 0
  %293 = vmatpush2.bf16.msra.mxu0 0
  %294 = vmatprep.subr.bf16.mxu0 0
  %295 = vmatpush2.bf16.msra.mxu0 0
  %296 = vmatprep.subr.bf16.mxu0 0
  %297 = vmatpush2.bf16.msra.mxu0 0
  %298 = vmatprep.subr.bf16.mxu0 0
  %299 = vmatpush2.bf16.msra.mxu0 0
  %300 = vmatprep.subr.bf16.mxu0 0
  %301 = vmatpush2.bf16.msra.mxu0 0
  %302 = vmatprep.subr.bf16.mxu0 0
  %303 = vmatpush2.bf16.msra.mxu0 0
  %304 = vmatprep.mubr.bf16.mxu0 0
  %305 = vmatmul.mubr.bf16.gmra.mxu0 %v270
  %v306 = vpop.f32.mrf.mxu0
  %v307 = vadd.f32 0.0, %v306
  %v308 = vpop.f32.mrf.mxu0
  %v309 = vpop.f32.mrf.mxu0
  %v310 = vpop.f32.mrf.mxu0
  %311 = vdwg.mxu0
  %v312 = vadd.f32 %v267, %v307
  %v313 = vtanh.pop %v312
  %s314 = scalar_lea.vmem %s4, 16
  %315 = vst.msk [vmem:[%s314] sm:$0xff] %vm142, %v313
  %s316 = scalar_lea.vmem [#allocation3], 24
  %v317 = vld [vmem:[%s316] sm:$0xff]
  %v318 = vpack.c.bf16 %v313, %v313
  %v320 = vsel %vm142, %v318, 0
  %322 = vmatprep.subr.bf16.mxu0 0
  %323 = vmatpush1.bf16.msra.mxu0 0
  %324 = vmatprep.subr.bf16.mxu0 0
  %325 = vmatpush1.bf16.msra.mxu0 0
  %326 = vmatprep.subr.bf16.mxu0 0
  %327 = vmatpush1.bf16.msra.mxu0 0
  %328 = vmatprep.subr.bf16.mxu0 0
  %329 = vmatpush1.bf16.msra.mxu0 0
  %330 = vmatprep.subr.bf16.mxu0 0
  %331 = vmatpush1.bf16.msra.mxu0 0
  %332 = vmatprep.subr.bf16.mxu0 0
  %333 = vmatpush1.bf16.msra.mxu0 0
  %334 = vmatprep.subr.bf16.mxu0 0
  %335 = vmatpush1.bf16.msra.mxu0 %v167
  %336 = vmatprep.subr.bf16.mxu0 0
  %337 = vmatpush1.bf16.msra.mxu0 %v166
  %338 = vmatprep.subr.bf16.mxu0 0
  %339 = vmatpush2.bf16.msra.mxu0 0
  %340 = vmatprep.subr.bf16.mxu0 0
  %341 = vmatpush2.bf16.msra.mxu0 0
  %342 = vmatprep.subr.bf16.mxu0 0
  %343 = vmatpush2.bf16.msra.mxu0 0
  %344 = vmatprep.subr.bf16.mxu0 0
  %345 = vmatpush2.bf16.msra.mxu0 0
  %346 = vmatprep.subr.bf16.mxu0 0
  %347 = vmatpush2.bf16.msra.mxu0 0
  %348 = vmatprep.subr.bf16.mxu0 0
  %349 = vmatpush2.bf16.msra.mxu0 0
  %350 = vmatprep.subr.bf16.mxu0 0
  %351 = vmatpush2.bf16.msra.mxu0 0
  %352 = vmatprep.subr.bf16.mxu0 0
  %353 = vmatpush2.bf16.msra.mxu0 0
  %354 = vmatprep.mubr.bf16.mxu0 0
  %355 = vmatmul.mubr.bf16.gmra.mxu0 %v320
  %v356 = vpop.f32.mrf.mxu0
  %v357 = vadd.f32 0.0, %v356
  %v358 = vpop.f32.mrf.mxu0
  %v359 = vpop.f32.mrf.mxu0
  %v360 = vpop.f32.mrf.mxu0
  %361 = vdwg.mxu0
  %v362 = vadd.f32 %v317, %v357
  %v363 = vtanh.pop %v362
  %s364 = scalar_lea.vmem %s4, 24
  %365 = vst.msk [vmem:[%s364] sm:$0xff] %vm142, %v363
  %s366 = scalar_lea.vmem [#allocation3], 32
  %v367 = vld [vmem:[%s366] sm:$0xff]
  %v368 = vpack.c.bf16 %v363, %v363
  %v370 = vsel %vm142, %v368, 0
  %372 = vmatprep.subr.bf16.mxu0 0
  %373 = vmatpush1.bf16.msra.mxu0 0
  %374 = vmatprep.subr.bf16.mxu0 0
  %375 = vmatpush1.bf16.msra.mxu0 0
  %376 = vmatprep.subr.bf16.mxu0 0
  %377 = vmatpush1.bf16.msra.mxu0 0
  %378 = vmatprep.subr.bf16.mxu0 0
  %379 = vmatpush1.bf16.msra.mxu0 0
  %380 = vmatprep.subr.bf16.mxu0 0
  %381 = vmatpush1.bf16.msra.mxu0 0
  %382 = vmatprep.subr.bf16.mxu0 0
  %383 = vmatpush1.bf16.msra.mxu0 0
  %384 = vmatprep.subr.bf16.mxu0 0
  %385 = vmatpush1.bf16.msra.mxu0 %v167
  %386 = vmatprep.subr.bf16.mxu0 0
  %387 = vmatpush1.bf16.msra.mxu0 %v166
  %388 = vmatprep.subr.bf16.mxu0 0
  %389 = vmatpush2.bf16.msra.mxu0 0
  %390 = vmatprep.subr.bf16.mxu0 0
  %391 = vmatpush2.bf16.msra.mxu0 0
  %392 = vmatprep.subr.bf16.mxu0 0
  %393 = vmatpush2.bf16.msra.mxu0 0
  %394 = vmatprep.subr.bf16.mxu0 0
  %395 = vmatpush2.bf16.msra.mxu0 0
  %396 = vmatprep.subr.bf16.mxu0 0
  %397 = vmatpush2.bf16.msra.mxu0 0
  %398 = vmatprep.subr.bf16.mxu0 0
  %399 = vmatpush2.bf16.msra.mxu0 0
  %400 = vmatprep.subr.bf16.mxu0 0
  %401 = vmatpush2.bf16.msra.mxu0 0
  %402 = vmatprep.subr.bf16.mxu0 0
  %403 = vmatpush2.bf16.msra.mxu0 0
  %404 = vmatprep.mubr.bf16.mxu0 0
  %405 = vmatmul.mubr.bf16.gmra.mxu0 %v370
  %v406 = vpop.f32.mrf.mxu0
  %v407 = vadd.f32 0.0, %v406
  %v408 = vpop.f32.mrf.mxu0
  %v409 = vpop.f32.mrf.mxu0
  %v410 = vpop.f32.mrf.mxu0
  %411 = vdwg.mxu0
  %v412 = vadd.f32 %v367, %v407
  %v413 = vtanh.pop %v412
  %s414 = scalar_lea.vmem %s4, 32
  %415 = vst.msk [vmem:[%s414] sm:$0xff] %vm142, %v413
  %s416 = scalar_lea.vmem [#allocation3], 40
  %v417 = vld [vmem:[%s416] sm:$0xff]
  %v418 = vpack.c.bf16 %v413, %v413
  %v420 = vsel %vm142, %v418, 0
  %422 = vmatprep.subr.bf16.mxu0 0
  %423 = vmatpush1.bf16.msra.mxu0 0
  %424 = vmatprep.subr.bf16.mxu0 0
  %425 = vmatpush1.bf16.msra.mxu0 0
  %426 = vmatprep.subr.bf16.mxu0 0
  %427 = vmatpush1.bf16.msra.mxu0 0
  %428 = vmatprep.subr.bf16.mxu0 0
  %429 = vmatpush1.bf16.msra.mxu0 0
  %430 = vmatprep.subr.bf16.mxu0 0
  %431 = vmatpush1.bf16.msra.mxu0 0
  %432 = vmatprep.subr.bf16.mxu0 0
  %433 = vmatpush1.bf16.msra.mxu0 0
  %434 = vmatprep.subr.bf16.mxu0 0
  %435 = vmatpush1.bf16.msra.mxu0 %v167
  %436 = vmatprep.subr.bf16.mxu0 0
  %437 = vmatpush1.bf16.msra.mxu0 %v166
  %438 = vmatprep.subr.bf16.mxu0 0
  %439 = vmatpush2.bf16.msra.mxu0 0
  %440 = vmatprep.subr.bf16.mxu0 0
  %441 = vmatpush2.bf16.msra.mxu0 0
  %442 = vmatprep.subr.bf16.mxu0 0
  %443 = vmatpush2.bf16.msra.mxu0 0
  %444 = vmatprep.subr.bf16.mxu0 0
  %445 = vmatpush2.bf16.msra.mxu0 0
  %446 = vmatprep.subr.bf16.mxu0 0
  %447 = vmatpush2.bf16.msra.mxu0 0
  %448 = vmatprep.subr.bf16.mxu0 0
  %449 = vmatpush2.bf16.msra.mxu0 0
  %450 = vmatprep.subr.bf16.mxu0 0
  %451 = vmatpush2.bf16.msra.mxu0 0
  %452 = vmatprep.subr.bf16.mxu0 0
  %453 = vmatpush2.bf16.msra.mxu0 0
  %454 = vmatprep.mubr.bf16.mxu0 0
  %455 = vmatmul.mubr.bf16.gmra.mxu0 %v420
  %v456 = vpop.f32.mrf.mxu0
  %v457 = vadd.f32 0.0, %v456
  %v458 = vpop.f32.mrf.mxu0
  %v459 = vpop.f32.mrf.mxu0
  %v460 = vpop.f32.mrf.mxu0
  %461 = vdwg.mxu0
  %v462 = vadd.f32 %v417, %v457
  %v463 = vtanh.pop %v462
  %s464 = scalar_lea.vmem %s4, 40
  %465 = vst.msk [vmem:[%s464] sm:$0xff] %vm142, %v463
  %s466 = scalar_lea.vmem [#allocation3], 48
  %v467 = vld [vmem:[%s466] sm:$0xff]
  %v468 = vpack.c.bf16 %v463, %v463
  %v470 = vsel %vm142, %v468, 0
  %472 = vmatprep.subr.bf16.mxu0 0
  %473 = vmatpush1.bf16.msra.mxu0 0
  %474 = vmatprep.subr.bf16.mxu0 0
  %475 = vmatpush1.bf16.msra.mxu0 0
  %476 = vmatprep.subr.bf16.mxu0 0
  %477 = vmatpush1.bf16.msra.mxu0 0
  %478 = vmatprep.subr.bf16.mxu0 0
  %479 = vmatpush1.bf16.msra.mxu0 0
  %480 = vmatprep.subr.bf16.mxu0 0
  %481 = vmatpush1.bf16.msra.mxu0 0
  %482 = vmatprep.subr.bf16.mxu0 0
  %483 = vmatpush1.bf16.msra.mxu0 0
  %484 = vmatprep.subr.bf16.mxu0 0
  %485 = vmatpush1.bf16.msra.mxu0 %v167
  %486 = vmatprep.subr.bf16.mxu0 0
  %487 = vmatpush1.bf16.msra.mxu0 %v166
  %488 = vmatprep.subr.bf16.mxu0 0
  %489 = vmatpush2.bf16.msra.mxu0 0
  %490 = vmatprep.subr.bf16.mxu0 0
  %491 = vmatpush2.bf16.msra.mxu0 0
  %492 = vmatprep.subr.bf16.mxu0 0
  %493 = vmatpush2.bf16.msra.mxu0 0
  %494 = vmatprep.subr.bf16.mxu0 0
  %495 = vmatpush2.bf16.msra.mxu0 0
  %496 = vmatprep.subr.bf16.mxu0 0
  %497 = vmatpush2.bf16.msra.mxu0 0
  %498 = vmatprep.subr.bf16.mxu0 0
  %499 = vmatpush2.bf16.msra.mxu0 0
  %500 = vmatprep.subr.bf16.mxu0 0
  %501 = vmatpush2.bf16.msra.mxu0 0
  %502 = vmatprep.subr.bf16.mxu0 0
  %503 = vmatpush2.bf16.msra.mxu0 0
  %504 = vmatprep.mubr.bf16.mxu0 0
  %505 = vmatmul.mubr.bf16.gmra.mxu0 %v470
  %v506 = vpop.f32.mrf.mxu0
  %v507 = vadd.f32 0.0, %v506
  %v508 = vpop.f32.mrf.mxu0
  %v509 = vpop.f32.mrf.mxu0
  %v510 = vpop.f32.mrf.mxu0
  %511 = vdwg.mxu0
  %v512 = vadd.f32 %v467, %v507
  %v513 = vtanh.pop %v512
  %s514 = scalar_lea.vmem %s4, 48
  %515 = vst.msk [vmem:[%s514] sm:$0xff] %vm142, %v513
  %s516 = scalar_lea.vmem [#allocation3], 56
  %v517 = vld [vmem:[%s516] sm:$0xff]
  %v518 = vpack.c.bf16 %v513, %v513
  %v520 = vsel %vm142, %v518, 0
  %522 = vmatprep.subr.bf16.mxu0 0
  %523 = vmatpush1.bf16.msra.mxu0 0
  %524 = vmatprep.subr.bf16.mxu0 0
  %525 = vmatpush1.bf16.msra.mxu0 0
  %526 = vmatprep.subr.bf16.mxu0 0
  %527 = vmatpush1.bf16.msra.mxu0 0
  %528 = vmatprep.subr.bf16.mxu0 0
  %529 = vmatpush1.bf16.msra.mxu0 0
  %530 = vmatprep.subr.bf16.mxu0 0
  %531 = vmatpush1.bf16.msra.mxu0 0
  %532 = vmatprep.subr.bf16.mxu0 0
  %533 = vmatpush1.bf16.msra.mxu0 0
  %534 = vmatprep.subr.bf16.mxu0 0
  %535 = vmatpush1.bf16.msra.mxu0 %v167
  %536 = vmatprep.subr.bf16.mxu0 0
  %537 = vmatpush1.bf16.msra.mxu0 %v166
  %538 = vmatprep.subr.bf16.mxu0 0
  %539 = vmatpush2.bf16.msra.mxu0 0
  %540 = vmatprep.subr.bf16.mxu0 0
  %541 = vmatpush2.bf16.msra.mxu0 0
  %542 = vmatprep.subr.bf16.mxu0 0
  %543 = vmatpush2.bf16.msra.mxu0 0
  %544 = vmatprep.subr.bf16.mxu0 0
  %545 = vmatpush2.bf16.msra.mxu0 0
  %546 = vmatprep.subr.bf16.mxu0 0
  %547 = vmatpush2.bf16.msra.mxu0 0
  %548 = vmatprep.subr.bf16.mxu0 0
  %549 = vmatpush2.bf16.msra.mxu0 0
  %550 = vmatprep.subr.bf16.mxu0 0
  %551 = vmatpush2.bf16.msra.mxu0 0
  %552 = vmatprep.subr.bf16.mxu0 0
  %553 = vmatpush2.bf16.msra.mxu0 0
  %554 = vmatprep.mubr.bf16.mxu0 0
  %555 = vmatmul.mubr.bf16.gmra.mxu0 %v520
  %v556 = vpop.f32.mrf.mxu0
  %v557 = vadd.f32 0.0, %v556
  %v558 = vpop.f32.mrf.mxu0
  %v559 = vpop.f32.mrf.mxu0
  %v560 = vpop.f32.mrf.mxu0
  %561 = vdwg.mxu0
  %v562 = vadd.f32 %v517, %v557
  %v563 = vtanh.pop %v562
  %s564 = scalar_lea.vmem %s4, 56
  %565 = vst.msk [vmem:[%s564] sm:$0xff] %vm142, %v563
  %566 = vst.msk [vmem:[#allocation2] sm:$0xff] %vm142, %v563
  // Predicated region
  $region22: #{multi_drnn_with_dilations.3} parent=0 // pred_check
    _
  $region23: #{multi_drnn_with_dilations.3} parent=0 // pred_check_branch
    %568 = sbr.rel (0) target = $region25
  $region24: #{multi_drnn_with_dilations.3} parent=0 // pred_region
    _
  $region25: #{multi_drnn_with_dilations.3} parent=0 // pred_fallthru
    _
  // Predicated region
  $region26: #{multi_drnn_with_dilations.3} parent=0 // pred_check
    _
  $region27: #{multi_drnn_with_dilations.3} parent=0 // pred_check_branch
    %570 = sbr.rel (0) target = $region29
  $region28: #{multi_drnn_with_dilations.3} parent=0 // pred_region
    _
  $region29: #{multi_drnn_with_dilations.3} parent=0 // pred_fallthru
    _

</llo_original>
